<compile_context>
chip_gen: v6e
topology: v6e:2x2x1
jax: 0.10.0
libtpu: 0.0.40
codegen_flags: <defaults>
</compile_context>

<pallas_src>
import functools

import jax
import jax.numpy as jnp
from jax.experimental import pallas as pl
from jax.experimental.pallas import tpu as pltpu


def _round_up(x, m):
    return ((x + m - 1) // m) * m


def _mlp_kernel(x_ref, w1_ref, b1_ref, w2_ref, b2_ref, w3_ref, b3_ref, o_ref):
    # Dropout(p=0.1) is a no-op in eval mode (identity), so it is not applied.
    # TODO(synk): training-mode dropout (Bernoulli mask via pltpu.prng_*) is
    # intentionally not implemented; this matches model.eval() semantics.
    x = x_ref[...].astype(jnp.bfloat16)  # f32->bf16 cast folded into the kernel (free on VALU slot)
    h = jnp.dot(x, w1_ref[...], preferred_element_type=jnp.float32)
    h = jnp.maximum(h + b1_ref[...], 0.0).astype(jnp.bfloat16)
    h = jnp.dot(h, w2_ref[...], preferred_element_type=jnp.float32)
    h = jnp.maximum(h + b2_ref[...], 0.0).astype(jnp.bfloat16)
    o = jnp.dot(h, w3_ref[...], preferred_element_type=jnp.float32)
    # TODO(synk): a lane-dense (transposed, batch->lanes) formulation would turn the
    # 16-wide masked stores into full-width vst; deferred -- the kernel is per-step /
    # dispatch-overhead bound at these sizes, not store-bound.
    o_ref[...] = (o + b3_ref[...]).astype(o_ref.dtype)


def _num_tensorcores():
    """Best-effort TensorCores-per-chip count (v7x = 2, v5e/v6e = 1)."""
    try:
        d = jax.devices()[0]
        nc = getattr(d, "num_cores", None)
        if isinstance(nc, int) and nc > 0:
            return nc
        if "v7" in str(getattr(d, "device_kind", "")).lower():
            return 2
    except Exception:
        pass
    return 1


def _choose_block(batch, cap, num_cores):
    """Batch tile selection.

    Single-TC chips: one full-batch block when it fits the cap (1 grid step).
    Dual-TC chips (v7x): a grid whose step count is a multiple of the TC count so
    the `parallel` batch axis shards evenly across cores (no 2-vs-1 tail).
    Tiles are 8-aligned unless a single block spans the whole batch (full-dim
    blocks are exempt from the (8,128) divisibility rule).
    """
    if num_cores <= 1:
        if batch <= cap:
            return batch
        n_tiles = -(-batch // cap)
    else:
        if batch <= 8 * num_cores:
            return batch
        n_tiles = num_cores * max(1, -(-batch // (cap * num_cores)))
    return _round_up(-(-batch // n_tiles), 8)


@functools.partial(jax.jit, static_argnames=("block_b", "num_cores", "out_dtype"))
def _forward_impl(x, params, *, block_b, num_cores, out_dtype):
    w1, b1, w2, b2, w3, b3 = params
    B, n_input = x.shape
    n_hidden = w1.shape[1]
    n_output = w3.shape[1]

    # Params are expected to be pre-cast once via prepare_params(); these casts are
    # no-ops in that case and only kick in for raw f32 params.
    cast = lambda a, dt: a if a.dtype == dt else a.astype(dt)
    w1, w2, w3 = (cast(w, jnp.bfloat16) for w in (w1, w2, w3))
    b1, b2, b3 = (cast(b, jnp.float32) for b in (b1, b2, b3))

    blk = _choose_block(B, block_b, num_cores)
    grid_b = pl.cdiv(B, blk)

    # Constant-index specs: the whole (~30 KB) weight/bias set stays resident in VMEM;
    # Pallas DMAs each tensor once since its block index never changes.
    # (pipeline_mode=pl.Buffered(1) would drop the second buffer; skipped -- ~15 KB,
    #  negligible at these sizes.)
    full = lambda shape: pl.BlockSpec(shape, lambda i: tuple(0 for _ in shape))

    return pl.pallas_call(
        _mlp_kernel,
        out_shape=jax.ShapeDtypeStruct((B, n_output), out_dtype),
        grid_spec=pltpu.PrefetchScalarGridSpec(
            num_scalar_prefetch=0,
            grid=(grid_b,),
            in_specs=[
                pl.BlockSpec((blk, n_input), lambda i: (i, 0)),   # x tile (f32; cast in-kernel)
                full((n_input, n_hidden)),                        # W1 (bf16)
                full((1, n_hidden)),                              # b1 (f32)
                full((n_hidden, n_hidden)),                       # W2 (bf16)
                full((1, n_hidden)),                              # b2 (f32)
                full((n_hidden, n_output)),                       # W3 (bf16)
                full((1, n_output)),                              # b3 (f32)
            ],
            out_specs=pl.BlockSpec((blk, n_output), lambda i: (i, 0)),
        ),
        compiler_params=pltpu.CompilerParams(
            # Batch axis is embarrassingly parallel -> shards across both TCs on v7x.
            dimension_semantics=("parallel",),
        ),
    )(x, w1, b1, w2, b2, w3, b3)


def neural_network_forward(x, params, *, block_b=2048, num_cores=None,
                           out_dtype=jnp.float32):
    """Pallas implementation of NeuralNetwork.forward (eval mode).

    block_b:   batch-tile cap (rows). Default 2048; VMEM use per tile is <1 MiB.
    num_cores: TensorCores per chip (auto-detected when None).
    out_dtype: output dtype; keep f32 to match PyTorch, pass bf16 to halve store bytes.
    """
    if num_cores is None:
        num_cores = _num_tensorcores()
    return _forward_impl(x, params, block_b=int(block_b),
                         num_cores=int(num_cores), out_dtype=out_dtype)


def init_params(key, n_input, n_hidden, n_output):
    """Deterministic init mimicking torch.nn.Linear default
    (U[-1/sqrt(fan_in), 1/sqrt(fan_in)]). Weights stored as (in_features, out_features),
    i.e. transposed vs PyTorch."""
    keys = jax.random.split(key, 6)

    def linear(kw, kb, fan_in, fan_out):
        bound = 1.0 / jnp.sqrt(fan_in)
        w = jax.random.uniform(kw, (fan_in, fan_out), jnp.float32, -bound, bound)
        b = jax.random.uniform(kb, (1, fan_out), jnp.float32, -bound, bound)
        return w, b

    w1, b1 = linear(keys[0], keys[1], n_input, n_hidden)
    w2, b2 = linear(keys[2], keys[3], n_hidden, n_hidden)
    w3, b3 = linear(keys[4], keys[5], n_hidden, n_output)
    return (w1, b1, w2, b2, w3, b3)


def prepare_params(params):
    """One-time param prep: bf16 weights (MXU-native), f32 biases.
    Call once at load time so no cast ops run on the per-forward path."""
    w1, b1, w2, b2, w3, b3 = params
    return (w1.astype(jnp.bfloat16), b1.astype(jnp.float32),
            w2.astype(jnp.bfloat16), b2.astype(jnp.float32),
            w3.astype(jnp.bfloat16), b3.astype(jnp.float32))


def _reference(x, params):
    """Pure-JAX reference mirroring the kernel's bf16 inputs / f32 accumulation."""
    w1, b1, w2, b2, w3, b3 = params
    bf, f32 = jnp.bfloat16, jnp.float32
    h = jnp.dot(x.astype(bf), w1.astype(bf), preferred_element_type=f32)
    h = jnp.maximum(h + b1.astype(f32), 0.0).astype(bf)
    h = jnp.dot(h, w2.astype(bf), preferred_element_type=f32)
    h = jnp.maximum(h + b2.astype(f32), 0.0).astype(bf)
    return jnp.dot(h, w3.astype(bf), preferred_element_type=f32) + b3.astype(f32)


if __name__ == "__main__":
    key = jax.random.PRNGKey(0)
    k_x, k_x2, k_p = jax.random.split(key, 3)

    n_input, n_hidden, n_output = 32, 64, 16
    params = prepare_params(init_params(k_p, n_input, n_hidden, n_output))

    x = jax.random.normal(k_x, (512, n_input), jnp.float32)
    ref = _reference(x, params)

    # Single-TC path (v5e/v6e): one full-batch tile, one grid step.
    out1 = jax.block_until_ready(neural_network_forward(x, params, num_cores=1))
    assert out1.shape == (512, n_output)
    assert jnp.allclose(out1, ref, atol=1e-2, rtol=1e-2), "mismatch (B=512, 1 TC)"

    # Dual-TC path (v7x): balanced 2-step parallel grid.
    out2 = jax.block_until_ready(neural_network_forward(x, params, num_cores=2))
    assert jnp.allclose(out2, ref, atol=1e-2, rtol=1e-2), "mismatch (B=512, 2 TC)"

    # Awkward batch: no wrapper pad; ragged last block handled by Pallas masked writeback.
    x2 = jax.random.normal(k_x2, (300, n_input), jnp.float32)
    ref2 = _reference(x2, params)
    out3 = jax.block_until_ready(neural_network_forward(x2, params))  # auto core count
    assert out3.shape == (300, n_output)
    assert jnp.allclose(out3, ref2, atol=1e-2, rtol=1e-2), "mismatch (B=300)"

    print("KERNEL_OK")
</pallas_src>

<mosaic_0001>
module attributes {stable_mosaic.version = 11 : i64} {
  func.func @_mlp_kernel(%arg0: i32, %arg1: memref<512x32xf32, #tpu.memory_space<vmem>>, %arg2: memref<32x64xbf16, #tpu.memory_space<vmem>>, %arg3: memref<1x64xf32, #tpu.memory_space<vmem>>, %arg4: memref<64x64xbf16, #tpu.memory_space<vmem>>, %arg5: memref<1x64xf32, #tpu.memory_space<vmem>>, %arg6: memref<64x16xbf16, #tpu.memory_space<vmem>>, %arg7: memref<1x16xf32, #tpu.memory_space<vmem>>, %arg8: memref<512x16xf32, #tpu.memory_space<vmem>>) attributes {dimension_semantics = [#tpu.dimension_semantics<parallel>], iteration_bounds = array<i64: 1>, scalar_prefetch = 0 : i64, scratch_operands = 0 : i64, tpu.core_type = #tpu.core_type<tc>, window_params = [{transform_indices = @transform_0, window_bounds = array<i64: 512, 32>}, {pipeline_mode = #tpu.pipeline_mode<synchronous>, transform_indices = @transform_1, window_bounds = array<i64: 32, 64>}, {pipeline_mode = #tpu.pipeline_mode<synchronous>, transform_indices = @transform_2, window_bounds = array<i64: 1, 64>}, {pipeline_mode = #tpu.pipeline_mode<synchronous>, transform_indices = @transform_3, window_bounds = array<i64: 64, 64>}, {pipeline_mode = #tpu.pipeline_mode<synchronous>, transform_indices = @transform_4, window_bounds = array<i64: 1, 64>}, {pipeline_mode = #tpu.pipeline_mode<synchronous>, transform_indices = @transform_5, window_bounds = array<i64: 64, 16>}, {pipeline_mode = #tpu.pipeline_mode<synchronous>, transform_indices = @transform_6, window_bounds = array<i64: 1, 16>}, {transform_indices = @transform_7, window_bounds = array<i64: 512, 16>}]} {
    %c0 = arith.constant 0 : index
    %c0_0 = arith.constant 0 : index
    %0 = vector.load %arg1[%c0, %c0_0] : memref<512x32xf32, #tpu.memory_space<vmem>>, vector<512x32xf32>
    %1 = arith.truncf %0 : vector<512x32xf32> to vector<512x32xbf16>
    %c0_1 = arith.constant 0 : index
    %c0_2 = arith.constant 0 : index
    %2 = vector.load %arg2[%c0_1, %c0_2] : memref<32x64xbf16, #tpu.memory_space<vmem>>, vector<32x64xbf16>
    %cst = arith.constant dense<0.000000e+00> : vector<512x64xf32>
    %3 = tpu.matmul %1, %2, %cst {dimension_numbers = #tpu.dot_dimension_numbers<[1], [0], [0], [1], [0, 0, 1, 1], [], []>} : vector<512x32xbf16>, vector<32x64xbf16>, vector<512x64xf32> -> vector<512x64xf32>
    %c0_3 = arith.constant 0 : index
    %c0_4 = arith.constant 0 : index
    %4 = vector.load %arg3[%c0_3, %c0_4] : memref<1x64xf32, #tpu.memory_space<vmem>>, vector<1x64xf32>
    %5 = vector.broadcast %4 : vector<1x64xf32> to vector<512x64xf32>
    %6 = arith.addf %3, %5 : vector<512x64xf32>
    %cst_5 = arith.constant 0.000000e+00 : f32
    %7 = vector.broadcast %cst_5 : f32 to vector<512x64xf32>
    %8 = arith.maximumf %6, %7 : vector<512x64xf32>
    %9 = arith.truncf %8 : vector<512x64xf32> to vector<512x64xbf16>
    %c0_6 = arith.constant 0 : index
    %c0_7 = arith.constant 0 : index
    %10 = vector.load %arg4[%c0_6, %c0_7] : memref<64x64xbf16, #tpu.memory_space<vmem>>, vector<64x64xbf16>
    %cst_8 = arith.constant dense<0.000000e+00> : vector<512x64xf32>
    %11 = tpu.matmul %9, %10, %cst_8 {dimension_numbers = #tpu.dot_dimension_numbers<[1], [0], [0], [1], [0, 0, 1, 1], [], []>} : vector<512x64xbf16>, vector<64x64xbf16>, vector<512x64xf32> -> vector<512x64xf32>
    %c0_9 = arith.constant 0 : index
    %c0_10 = arith.constant 0 : index
    %12 = vector.load %arg5[%c0_9, %c0_10] : memref<1x64xf32, #tpu.memory_space<vmem>>, vector<1x64xf32>
    %13 = vector.broadcast %12 : vector<1x64xf32> to vector<512x64xf32>
    %14 = arith.addf %11, %13 : vector<512x64xf32>
    %cst_11 = arith.constant 0.000000e+00 : f32
    %15 = vector.broadcast %cst_11 : f32 to vector<512x64xf32>
    %16 = arith.maximumf %14, %15 : vector<512x64xf32>
    %17 = arith.truncf %16 : vector<512x64xf32> to vector<512x64xbf16>
    %c0_12 = arith.constant 0 : index
    %c0_13 = arith.constant 0 : index
    %18 = vector.load %arg6[%c0_12, %c0_13] : memref<64x16xbf16, #tpu.memory_space<vmem>>, vector<64x16xbf16>
    %cst_14 = arith.constant dense<0.000000e+00> : vector<512x16xf32>
    %19 = tpu.matmul %17, %18, %cst_14 {dimension_numbers = #tpu.dot_dimension_numbers<[1], [0], [0], [1], [0, 0, 1, 1], [], []>} : vector<512x64xbf16>, vector<64x16xbf16>, vector<512x16xf32> -> vector<512x16xf32>
    %c0_15 = arith.constant 0 : index
    %c0_16 = arith.constant 0 : index
    %20 = vector.load %arg7[%c0_15, %c0_16] : memref<1x16xf32, #tpu.memory_space<vmem>>, vector<1x16xf32>
    %21 = vector.broadcast %20 : vector<1x16xf32> to vector<512x16xf32>
    %22 = arith.addf %19, %21 : vector<512x16xf32>
    %c0_17 = arith.constant 0 : index
    %c0_18 = arith.constant 0 : index
    %23 = vector.load %arg8[%c0_17, %c0_18] : memref<512x16xf32, #tpu.memory_space<vmem>>, vector<512x16xf32>
    tpu.vector_store %arg8[%c0_17, %c0_18], %22 {strides = array<i32>} : memref<512x16xf32, #tpu.memory_space<vmem>>, vector<512x16xf32>,
    return
  }
  func.func @transform_0(%arg0: i32) -> (i32, i32) {
    %c0_i32 = arith.constant 0 : i32
    %c0_i32_0 = arith.constant 0 : i32
    return %arg0, %c0_i32 : i32, i32
  }
  func.func @transform_1(%arg0: i32) -> (i32, i32) {
    %c0_i32 = arith.constant 0 : i32
    %c0_i32_0 = arith.constant 0 : i32
    %c0_i32_1 = arith.constant 0 : i32
    return %c0_i32, %c0_i32_0 : i32, i32
  }
  func.func @transform_2(%arg0: i32) -> (i32, i32) {
    %c0_i32 = arith.constant 0 : i32
    %c0_i32_0 = arith.constant 0 : i32
    %c0_i32_1 = arith.constant 0 : i32
    return %c0_i32, %c0_i32_0 : i32, i32
  }
  func.func @transform_3(%arg0: i32) -> (i32, i32) {
    %c0_i32 = arith.constant 0 : i32
    %c0_i32_0 = arith.constant 0 : i32
    %c0_i32_1 = arith.constant 0 : i32
    return %c0_i32, %c0_i32_0 : i32, i32
  }
  func.func @transform_4(%arg0: i32) -> (i32, i32) {
    %c0_i32 = arith.constant 0 : i32
    %c0_i32_0 = arith.constant 0 : i32
    %c0_i32_1 = arith.constant 0 : i32
    return %c0_i32, %c0_i32_0 : i32, i32
  }
  func.func @transform_5(%arg0: i32) -> (i32, i32) {
    %c0_i32 = arith.constant 0 : i32
    %c0_i32_0 = arith.constant 0 : i32
    %c0_i32_1 = arith.constant 0 : i32
    return %c0_i32, %c0_i32_0 : i32, i32
  }
  func.func @transform_6(%arg0: i32) -> (i32, i32) {
    %c0_i32 = arith.constant 0 : i32
    %c0_i32_0 = arith.constant 0 : i32
    %c0_i32_1 = arith.constant 0 : i32
    return %c0_i32, %c0_i32_0 : i32, i32
  }
  func.func @transform_7(%arg0: i32) -> (i32, i32) {
    %c0_i32 = arith.constant 0 : i32
    %c0_i32_0 = arith.constant 0 : i32
    return %arg0, %c0_i32 : i32, i32
  }
}

</mosaic_0001>

<llo_original>
// kernel: _forward_impl.1
$region0: #{_forward_impl.1}
  #allocation0 [shape = 'u32[]', space=smem, size = 0x4, offset = 0x4, fixed_abs, tag = 'smem constant byte address 0x4 - core index']
  #allocation1 [shape = 'u32[144,128]{1,0:T(1,128)}', space=vmem, size = 0x12000, scoped, tag = 'internal scratch']
  %s0 = inlined_call_operand.vmem [shape: f32[512,32], index: 0, kind: input, shape index: {}]
  %s1 = inlined_call_operand.vmem [shape: bf16[32,64], index: 1, kind: input, shape index: {}]
  %s2 = inlined_call_operand.vmem [shape: f32[1,64], index: 2, kind: input, shape index: {}]
  %s3 = inlined_call_operand.vmem [shape: bf16[64,64], index: 3, kind: input, shape index: {}]
  %s4 = inlined_call_operand.vmem [shape: f32[1,64], index: 4, kind: input, shape index: {}]
  %s5 = inlined_call_operand.vmem [shape: bf16[64,16], index: 5, kind: input, shape index: {}]
  %s6 = inlined_call_operand.vmem [shape: f32[1,16], index: 6, kind: input, shape index: {}]
  %s7 = inlined_call_operand.vmem [shape: f32[512,16], index: 7, kind: output, shape index: {}]
  %s8 = sld [smem:[#allocation0]]
  $region38: #{_forward_impl.1} parent=0
    _
  %s10 = ssub.s32 1, %s8
  %s11 = scalar_select 0, %s10, %s8
  // Predicated region
  $region2: #{_forward_impl.1} parent=0 // pred_check
    _
  $region3: #{_forward_impl.1} parent=0 // pred_check_branch
    %13 = sbr.rel (0) target = $region5
  $region4: #{_forward_impl.1} parent=0 // pred_region
    _
  $region5: #{_forward_impl.1} parent=0 // pred_fallthru
    _
  // Predicated region
  $region6: #{_forward_impl.1} parent=0 // pred_check
    _
  $region7: #{_forward_impl.1} parent=0 // pred_check_branch
    %15 = sbr.rel (0) target = $region9
  $region8: #{_forward_impl.1} parent=0 // pred_region
    _
  $region9: #{_forward_impl.1} parent=0 // pred_fallthru
    _
  // Predicated region
  $region10: #{_forward_impl.1} parent=0 // pred_check
    _
  $region11: #{_forward_impl.1} parent=0 // pred_check_branch
    %17 = sbr.rel (0) target = $region13
  $region12: #{_forward_impl.1} parent=0 // pred_region
    _
  $region13: #{_forward_impl.1} parent=0 // pred_fallthru
    _
  // Predicated region
  $region14: #{_forward_impl.1} parent=0 // pred_check
    _
  $region15: #{_forward_impl.1} parent=0 // pred_check_branch
    %19 = sbr.rel (0) target = $region17
  $region16: #{_forward_impl.1} parent=0 // pred_region
    _
  $region17: #{_forward_impl.1} parent=0 // pred_fallthru
    _
  // Predicated region
  $region18: #{_forward_impl.1} parent=0 // pred_check
    _
  $region19: #{_forward_impl.1} parent=0 // pred_check_branch
    %21 = sbr.rel (0) target = $region21
  $region20: #{_forward_impl.1} parent=0 // pred_region
    _
  $region21: #{_forward_impl.1} parent=0 // pred_fallthru
    _
  // Predicated region
  $region22: #{_forward_impl.1} parent=0 // pred_check
    _
  $region23: #{_forward_impl.1} parent=0 // pred_check_branch
    %23 = sbr.rel (0) target = $region25
  $region24: #{_forward_impl.1} parent=0 // pred_region
    _
  $region25: #{_forward_impl.1} parent=0 // pred_fallthru
    _
  // Predicated region
  $region26: #{_forward_impl.1} parent=0 // pred_check
    _
  $region27: #{_forward_impl.1} parent=0 // pred_check_branch
    %25 = sbr.rel (0) target = $region29
  $region28: #{_forward_impl.1} parent=0 // pred_region
    _
  $region29: #{_forward_impl.1} parent=0 // pred_fallthru
    _
  %v27 = vld [vmem:[%s0] sm:$0xff]
  %v28 = vld [vmem:[%s0 + $0x8] sm:$0xff]
  %v29 = vld [vmem:[%s0 + $0x10] sm:$0xff]
  %v30 = vld [vmem:[%s0 + $0x18] sm:$0xff]
  %v31 = vld [vmem:[%s0 + $0x20] sm:$0xff]
  %v32 = vld [vmem:[%s0 + $0x28] sm:$0xff]
  %v33 = vld [vmem:[%s0 + $0x30] sm:$0xff]
  %v34 = vld [vmem:[%s0 + $0x38] sm:$0xff]
  %v35 = vld [vmem:[%s0 + $0x40] sm:$0xff]
  %v36 = vld [vmem:[%s0 + $0x48] sm:$0xff]
  %v37 = vld [vmem:[%s0 + $0x50] sm:$0xff]
  %v38 = vld [vmem:[%s0 + $0x58] sm:$0xff]
  %v39 = vld [vmem:[%s0 + $0x60] sm:$0xff]
  %v40 = vld [vmem:[%s0 + $0x68] sm:$0xff]
  %v41 = vld [vmem:[%s0 + $0x70] sm:$0xff]
  %v42 = vld [vmem:[%s0 + $0x78] sm:$0xff]
  %v43 = vld [vmem:[%s0 + $0x80] sm:$0xff]
  %v44 = vld [vmem:[%s0 + $0x88] sm:$0xff]
  %v45 = vld [vmem:[%s0 + $0x90] sm:$0xff]
  %v46 = vld [vmem:[%s0 + $0x98] sm:$0xff]
  %v47 = vld [vmem:[%s0 + $0xa0] sm:$0xff]
  %v48 = vld [vmem:[%s0 + $0xa8] sm:$0xff]
  %v49 = vld [vmem:[%s0 + $0xb0] sm:$0xff]
  %v50 = vld [vmem:[%s0 + $0xb8] sm:$0xff]
  %v51 = vld [vmem:[%s0 + $0xc0] sm:$0xff]
  %v52 = vld [vmem:[%s0 + $0xc8] sm:$0xff]
  %v53 = vld [vmem:[%s0 + $0xd0] sm:$0xff]
  %v54 = vld [vmem:[%s0 + $0xd8] sm:$0xff]
  %v55 = vld [vmem:[%s0 + $0xe0] sm:$0xff]
  %v56 = vld [vmem:[%s0 + $0xe8] sm:$0xff]
  %v57 = vld [vmem:[%s0 + $0xf0] sm:$0xff]
  %v58 = vld [vmem:[%s0 + $0xf8] sm:$0xff]
  %v59 = vld [vmem:[%s0 + $0x100] sm:$0xff]
  %v60 = vld [vmem:[%s0 + $0x108] sm:$0xff]
  %v61 = vld [vmem:[%s0 + $0x110] sm:$0xff]
  %v62 = vld [vmem:[%s0 + $0x118] sm:$0xff]
  %v63 = vld [vmem:[%s0 + $0x120] sm:$0xff]
  %v64 = vld [vmem:[%s0 + $0x128] sm:$0xff]
  %v65 = vld [vmem:[%s0 + $0x130] sm:$0xff]
  %v66 = vld [vmem:[%s0 + $0x138] sm:$0xff]
  %v67 = vld [vmem:[%s0 + $0x140] sm:$0xff]
  %v68 = vld [vmem:[%s0 + $0x148] sm:$0xff]
  %v69 = vld [vmem:[%s0 + $0x150] sm:$0xff]
  %v70 = vld [vmem:[%s0 + $0x158] sm:$0xff]
  %v71 = vld [vmem:[%s0 + $0x160] sm:$0xff]
  %v72 = vld [vmem:[%s0 + $0x168] sm:$0xff]
  %v73 = vld [vmem:[%s0 + $0x170] sm:$0xff]
  %v74 = vld [vmem:[%s0 + $0x178] sm:$0xff]
  %v75 = vld [vmem:[%s0 + $0x180] sm:$0xff]
  %v76 = vld [vmem:[%s0 + $0x188] sm:$0xff]
  %v77 = vld [vmem:[%s0 + $0x190] sm:$0xff]
  %v78 = vld [vmem:[%s0 + $0x198] sm:$0xff]
  %v79 = vld [vmem:[%s0 + $0x1a0] sm:$0xff]
  %v80 = vld [vmem:[%s0 + $0x1a8] sm:$0xff]
  %v81 = vld [vmem:[%s0 + $0x1b0] sm:$0xff]
  %v82 = vld [vmem:[%s0 + $0x1b8] sm:$0xff]
  %v83 = vld [vmem:[%s0 + $0x1c0] sm:$0xff]
  %v84 = vld [vmem:[%s0 + $0x1c8] sm:$0xff]
  %v85 = vld [vmem:[%s0 + $0x1d0] sm:$0xff]
  %v86 = vld [vmem:[%s0 + $0x1d8] sm:$0xff]
  %v87 = vld [vmem:[%s0 + $0x1e0] sm:$0xff]
  %v88 = vld [vmem:[%s0 + $0x1e8] sm:$0xff]
  %v89 = vld [vmem:[%s0 + $0x1f0] sm:$0xff]
  %v90 = vld [vmem:[%s0 + $0x1f8] sm:$0xff]
  %v91 = vpack.c.bf16 %v28, %v27
  %v92 = vpack.c.bf16 %v30, %v29
  %v93 = vpack.c.bf16 %v32, %v31
  %v94 = vpack.c.bf16 %v34, %v33
  %v95 = vpack.c.bf16 %v36, %v35
  %v96 = vpack.c.bf16 %v38, %v37
  %v97 = vpack.c.bf16 %v40, %v39
  %v98 = vpack.c.bf16 %v42, %v41
  %v99 = vpack.c.bf16 %v44, %v43
  %v100 = vpack.c.bf16 %v46, %v45
  %v101 = vpack.c.bf16 %v48, %v47
  %v102 = vpack.c.bf16 %v50, %v49
  %v103 = vpack.c.bf16 %v52, %v51
  %v104 = vpack.c.bf16 %v54, %v53
  %v105 = vpack.c.bf16 %v56, %v55
  %v106 = vpack.c.bf16 %v58, %v57
  %v107 = vpack.c.bf16 %v60, %v59
  %v108 = vpack.c.bf16 %v62, %v61
  %v109 = vpack.c.bf16 %v64, %v63
  %v110 = vpack.c.bf16 %v66, %v65
  %v111 = vpack.c.bf16 %v68, %v67
  %v112 = vpack.c.bf16 %v70, %v69
  %v113 = vpack.c.bf16 %v72, %v71
  %v114 = vpack.c.bf16 %v74, %v73
  %v115 = vpack.c.bf16 %v76, %v75
  %v116 = vpack.c.bf16 %v78, %v77
  %v117 = vpack.c.bf16 %v80, %v79
  %v118 = vpack.c.bf16 %v82, %v81
  %v119 = vpack.c.bf16 %v84, %v83
  %v120 = vpack.c.bf16 %v86, %v85
  %v121 = vpack.c.bf16 %v88, %v87
  %v122 = vpack.c.bf16 %v90, %v89
  %v123 = vld [vmem:[%s1] sm:$0xf]
  %v124 = vld [vmem:[%s1 + $0x4] sm:$0xf]
  %v125 = vld [vmem:[%s1 + $0x8] sm:$0xf]
  %v126 = vld [vmem:[%s1 + $0xc] sm:$0xf]
  %v127 = vld [vmem:[%s2] sm:$0x1]
  %v129 = vlaneseq
  %v130 = vshrl.u32 %v129, 7
  %v131 = vsub.s32 0, %v130
  %v132 = vrot.slane %v127, %v131
  %v138 = vunpack.c.l.b16 %v123
  %v139 = vunpack.c.l.b16 %v124
  %v140 = vunpack.c.l.b16 %v125
  %v141 = vunpack.c.l.b16 %v126
  %v142 = vpack.c.b16 %v139, %v138
  %v143 = vpack.c.b16 %v141, %v140
  %vm146 = vcmask 261120
  %v148 = vsel %vm146, %v91, 0
  %v151 = vsel %vm146, %v92, 0
  %v154 = vsel %vm146, %v93, 0
  %v157 = vsel %vm146, %v94, 0
  %v160 = vsel %vm146, %v95, 0
  %v163 = vsel %vm146, %v96, 0
  %v166 = vsel %vm146, %v97, 0
  %v169 = vsel %vm146, %v98, 0
  %v172 = vsel %vm146, %v99, 0
  %v175 = vsel %vm146, %v100, 0
  %v178 = vsel %vm146, %v101, 0
  %v181 = vsel %vm146, %v102, 0
  %v184 = vsel %vm146, %v103, 0
  %v187 = vsel %vm146, %v104, 0
  %v190 = vsel %vm146, %v105, 0
  %v193 = vsel %vm146, %v106, 0
  %v196 = vsel %vm146, %v107, 0
  %v199 = vsel %vm146, %v108, 0
  %v202 = vsel %vm146, %v109, 0
  %v205 = vsel %vm146, %v110, 0
  %v208 = vsel %vm146, %v111, 0
  %v211 = vsel %vm146, %v112, 0
  %v214 = vsel %vm146, %v113, 0
  %v217 = vsel %vm146, %v114, 0
  %v220 = vsel %vm146, %v115, 0
  %v223 = vsel %vm146, %v116, 0
  %v226 = vsel %vm146, %v117, 0
  %v229 = vsel %vm146, %v118, 0
  %v232 = vsel %vm146, %v119, 0
  %v235 = vsel %vm146, %v120, 0
  %v238 = vsel %vm146, %v121, 0
  %v241 = vsel %vm146, %v122, 0
  %243 = vmatprep.subr.bf16.mxu0 0
  %244 = vmatpush1.bf16.msra.mxu0 0
  %245 = vmatprep.subr.bf16.mxu0 0
  %246 = vmatpush1.bf16.msra.mxu0 0
  %247 = vmatprep.subr.bf16.mxu0 0
  %248 = vmatpush1.bf16.msra.mxu0 0
  %249 = vmatprep.subr.bf16.mxu0 0
  %250 = vmatpush1.bf16.msra.mxu0 0
  %251 = vmatprep.subr.bf16.mxu0 0
  %252 = vmatpush1.bf16.msra.mxu0 0
  %253 = vmatprep.subr.bf16.mxu0 0
  %254 = vmatpush1.bf16.msra.mxu0 0
  %255 = vmatprep.subr.bf16.mxu0 0
  %256 = vmatpush1.bf16.msra.mxu0 %v143
  %257 = vmatprep.subr.bf16.mxu0 0
  %258 = vmatpush1.bf16.msra.mxu0 %v142
  %259 = vmatprep.subr.bf16.mxu0 0
  %260 = vmatpush2.bf16.msra.mxu0 0
  %261 = vmatprep.subr.bf16.mxu0 0
  %262 = vmatpush2.bf16.msra.mxu0 0
  %263 = vmatprep.subr.bf16.mxu0 0
  %264 = vmatpush2.bf16.msra.mxu0 0
  %265 = vmatprep.subr.bf16.mxu0 0
  %266 = vmatpush2.bf16.msra.mxu0 0
  %267 = vmatprep.subr.bf16.mxu0 0
  %268 = vmatpush2.bf16.msra.mxu0 0
  %269 = vmatprep.subr.bf16.mxu0 0
  %270 = vmatpush2.bf16.msra.mxu0 0
  %271 = vmatprep.subr.bf16.mxu0 0
  %272 = vmatpush2.bf16.msra.mxu0 0
  %273 = vmatprep.subr.bf16.mxu0 0
  %274 = vmatpush2.bf16.msra.mxu0 0
  %275 = vmatprep.mubr.bf16.mxu0 0
  %276 = vmatmul.mubr.bf16.gmra.mxu0 %v148
  %v277 = vpop.f32.mrf.mxu0
  %v278 = vadd.f32 %v132, %v277
  %v279 = vpop.f32.mrf.mxu0
  %v280 = vpop.f32.mrf.mxu0
  %v281 = vadd.f32 %v132, %v280
  %v282 = vpop.f32.mrf.mxu0
  %283 = vmatprep.mubr.bf16.mxu0 0
  %284 = vmatmul.mubr.bf16.gmra.mxu0 %v151
  %v285 = vpop.f32.mrf.mxu0
  %v286 = vadd.f32 %v132, %v285
  %v287 = vpop.f32.mrf.mxu0
  %v288 = vpop.f32.mrf.mxu0
  %v289 = vadd.f32 %v132, %v288
  %v290 = vpop.f32.mrf.mxu0
  %291 = vmatprep.mubr.bf16.mxu0 0
  %292 = vmatmul.mubr.bf16.gmra.mxu0 %v154
  %v293 = vpop.f32.mrf.mxu0
  %v294 = vadd.f32 %v132, %v293
  %v295 = vpop.f32.mrf.mxu0
  %v296 = vpop.f32.mrf.mxu0
  %v297 = vadd.f32 %v132, %v296
  %v298 = vpop.f32.mrf.mxu0
  %299 = vmatprep.mubr.bf16.mxu0 0
  %300 = vmatmul.mubr.bf16.gmra.mxu0 %v157
  %v301 = vpop.f32.mrf.mxu0
  %v302 = vadd.f32 %v132, %v301
  %v303 = vpop.f32.mrf.mxu0
  %v304 = vpop.f32.mrf.mxu0
  %v305 = vadd.f32 %v132, %v304
  %v306 = vpop.f32.mrf.mxu0
  %307 = vmatprep.mubr.bf16.mxu0 0
  %308 = vmatmul.mubr.bf16.gmra.mxu0 %v160
  %v309 = vpop.f32.mrf.mxu0
  %v310 = vadd.f32 %v132, %v309
  %v311 = vpop.f32.mrf.mxu0
  %v312 = vpop.f32.mrf.mxu0
  %v313 = vadd.f32 %v132, %v312
  %v314 = vpop.f32.mrf.mxu0
  %315 = vmatprep.mubr.bf16.mxu0 0
  %316 = vmatmul.mubr.bf16.gmra.mxu0 %v163
  %v317 = vpop.f32.mrf.mxu0
  %v318 = vadd.f32 %v132, %v317
  %v319 = vpop.f32.mrf.mxu0
  %v320 = vpop.f32.mrf.mxu0
  %v321 = vadd.f32 %v132, %v320
  %v322 = vpop.f32.mrf.mxu0
  %323 = vmatprep.mubr.bf16.mxu0 0
  %324 = vmatmul.mubr.bf16.gmra.mxu0 %v166
  %v325 = vpop.f32.mrf.mxu0
  %v326 = vadd.f32 %v132, %v325
  %v327 = vpop.f32.mrf.mxu0
  %v328 = vpop.f32.mrf.mxu0
  %v329 = vadd.f32 %v132, %v328
  %v330 = vpop.f32.mrf.mxu0
  %331 = vmatprep.mubr.bf16.mxu0 0
  %332 = vmatmul.mubr.bf16.gmra.mxu0 %v169
  %v333 = vpop.f32.mrf.mxu0
  %v334 = vadd.f32 %v132, %v333
  %v335 = vpop.f32.mrf.mxu0
  %v336 = vpop.f32.mrf.mxu0
  %v337 = vadd.f32 %v132, %v336
  %v338 = vpop.f32.mrf.mxu0
  %339 = vmatprep.mubr.bf16.mxu0 0
  %340 = vmatmul.mubr.bf16.gmra.mxu0 %v172
  %v341 = vpop.f32.mrf.mxu0
  %v342 = vadd.f32 %v132, %v341
  %v343 = vpop.f32.mrf.mxu0
  %v344 = vpop.f32.mrf.mxu0
  %v345 = vadd.f32 %v132, %v344
  %v346 = vpop.f32.mrf.mxu0
  %347 = vmatprep.mubr.bf16.mxu0 0
  %348 = vmatmul.mubr.bf16.gmra.mxu0 %v175
  %v349 = vpop.f32.mrf.mxu0
  %v350 = vadd.f32 %v132, %v349
  %v351 = vpop.f32.mrf.mxu0
  %v352 = vpop.f32.mrf.mxu0
  %v353 = vadd.f32 %v132, %v352
  %v354 = vpop.f32.mrf.mxu0
  %355 = vmatprep.mubr.bf16.mxu0 0
  %356 = vmatmul.mubr.bf16.gmra.mxu0 %v178
  %v357 = vpop.f32.mrf.mxu0
  %v358 = vadd.f32 %v132, %v357
  %v359 = vpop.f32.mrf.mxu0
  %v360 = vpop.f32.mrf.mxu0
  %v361 = vadd.f32 %v132, %v360
  %v362 = vpop.f32.mrf.mxu0
  %363 = vmatprep.mubr.bf16.mxu0 0
  %364 = vmatmul.mubr.bf16.gmra.mxu0 %v181
  %v365 = vpop.f32.mrf.mxu0
  %v366 = vadd.f32 %v132, %v365
  %v367 = vpop.f32.mrf.mxu0
  %v368 = vpop.f32.mrf.mxu0
  %v369 = vadd.f32 %v132, %v368
  %v370 = vpop.f32.mrf.mxu0
  %371 = vmatprep.mubr.bf16.mxu0 0
  %372 = vmatmul.mubr.bf16.gmra.mxu0 %v184
  %v373 = vpop.f32.mrf.mxu0
  %v374 = vadd.f32 %v132, %v373
  %v375 = vpop.f32.mrf.mxu0
  %v376 = vpop.f32.mrf.mxu0
  %v377 = vadd.f32 %v132, %v376
  %v378 = vpop.f32.mrf.mxu0
  %379 = vmatprep.mubr.bf16.mxu0 0
  %380 = vmatmul.mubr.bf16.gmra.mxu0 %v187
  %v381 = vpop.f32.mrf.mxu0
  %v382 = vadd.f32 %v132, %v381
  %v383 = vpop.f32.mrf.mxu0
  %v384 = vpop.f32.mrf.mxu0
  %v385 = vadd.f32 %v132, %v384
  %v386 = vpop.f32.mrf.mxu0
  %387 = vmatprep.mubr.bf16.mxu0 0
  %388 = vmatmul.mubr.bf16.gmra.mxu0 %v190
  %v389 = vpop.f32.mrf.mxu0
  %v390 = vadd.f32 %v132, %v389
  %v391 = vpop.f32.mrf.mxu0
  %v392 = vpop.f32.mrf.mxu0
  %v393 = vadd.f32 %v132, %v392
  %v394 = vpop.f32.mrf.mxu0
  %395 = vmatprep.mubr.bf16.mxu0 0
  %396 = vmatmul.mubr.bf16.gmra.mxu0 %v193
  %v397 = vpop.f32.mrf.mxu0
  %v398 = vadd.f32 %v132, %v397
  %v399 = vpop.f32.mrf.mxu0
  %v400 = vpop.f32.mrf.mxu0
  %v401 = vadd.f32 %v132, %v400
  %v402 = vpop.f32.mrf.mxu0
  %403 = vmatprep.mubr.bf16.mxu0 0
  %404 = vmatmul.mubr.bf16.gmra.mxu0 %v196
  %v405 = vpop.f32.mrf.mxu0
  %v406 = vadd.f32 %v132, %v405
  %v407 = vpop.f32.mrf.mxu0
  %v408 = vpop.f32.mrf.mxu0
  %v409 = vadd.f32 %v132, %v408
  %v410 = vpop.f32.mrf.mxu0
  %411 = vmatprep.mubr.bf16.mxu0 0
  %412 = vmatmul.mubr.bf16.gmra.mxu0 %v199
  %v413 = vpop.f32.mrf.mxu0
  %v414 = vadd.f32 %v132, %v413
  %v415 = vpop.f32.mrf.mxu0
  %v416 = vpop.f32.mrf.mxu0
  %v417 = vadd.f32 %v132, %v416
  %v418 = vpop.f32.mrf.mxu0
  %419 = vmatprep.mubr.bf16.mxu0 0
  %420 = vmatmul.mubr.bf16.gmra.mxu0 %v202
  %v421 = vpop.f32.mrf.mxu0
  %v422 = vadd.f32 %v132, %v421
  %v423 = vpop.f32.mrf.mxu0
  %v424 = vpop.f32.mrf.mxu0
  %v425 = vadd.f32 %v132, %v424
  %v426 = vpop.f32.mrf.mxu0
  %427 = vmatprep.mubr.bf16.mxu0 0
  %428 = vmatmul.mubr.bf16.gmra.mxu0 %v205
  %v429 = vpop.f32.mrf.mxu0
  %v430 = vadd.f32 %v132, %v429
  %v431 = vpop.f32.mrf.mxu0
  %v432 = vpop.f32.mrf.mxu0
  %v433 = vadd.f32 %v132, %v432
  %v434 = vpop.f32.mrf.mxu0
  %435 = vmatprep.mubr.bf16.mxu0 0
  %436 = vmatmul.mubr.bf16.gmra.mxu0 %v208
  %v437 = vpop.f32.mrf.mxu0
  %v438 = vadd.f32 %v132, %v437
  %v439 = vpop.f32.mrf.mxu0
  %v440 = vpop.f32.mrf.mxu0
  %v441 = vadd.f32 %v132, %v440
  %v442 = vpop.f32.mrf.mxu0
  %443 = vmatprep.mubr.bf16.mxu0 0
  %444 = vmatmul.mubr.bf16.gmra.mxu0 %v211
  %v445 = vpop.f32.mrf.mxu0
  %v446 = vadd.f32 %v132, %v445
  %v447 = vpop.f32.mrf.mxu0
  %v448 = vpop.f32.mrf.mxu0
  %v449 = vadd.f32 %v132, %v448
  %v450 = vpop.f32.mrf.mxu0
  %451 = vmatprep.mubr.bf16.mxu0 0
  %452 = vmatmul.mubr.bf16.gmra.mxu0 %v214
  %v453 = vpop.f32.mrf.mxu0
  %v454 = vadd.f32 %v132, %v453
  %v455 = vpop.f32.mrf.mxu0
  %v456 = vpop.f32.mrf.mxu0
  %v457 = vadd.f32 %v132, %v456
  %v458 = vpop.f32.mrf.mxu0
  %459 = vmatprep.mubr.bf16.mxu0 0
  %460 = vmatmul.mubr.bf16.gmra.mxu0 %v217
  %v461 = vpop.f32.mrf.mxu0
  %v462 = vadd.f32 %v132, %v461
  %v463 = vpop.f32.mrf.mxu0
  %v464 = vpop.f32.mrf.mxu0
  %v465 = vadd.f32 %v132, %v464
  %v466 = vpop.f32.mrf.mxu0
  %467 = vmatprep.mubr.bf16.mxu0 0
  %468 = vmatmul.mubr.bf16.gmra.mxu0 %v220
  %v469 = vpop.f32.mrf.mxu0
  %v470 = vadd.f32 %v132, %v469
  %v471 = vpop.f32.mrf.mxu0
  %v472 = vpop.f32.mrf.mxu0
  %v473 = vadd.f32 %v132, %v472
  %v474 = vpop.f32.mrf.mxu0
  %475 = vmatprep.mubr.bf16.mxu0 0
  %476 = vmatmul.mubr.bf16.gmra.mxu0 %v223
  %v477 = vpop.f32.mrf.mxu0
  %v478 = vadd.f32 %v132, %v477
  %v479 = vpop.f32.mrf.mxu0
  %v480 = vpop.f32.mrf.mxu0
  %v481 = vadd.f32 %v132, %v480
  %v482 = vpop.f32.mrf.mxu0
  %483 = vmatprep.mubr.bf16.mxu0 0
  %484 = vmatmul.mubr.bf16.gmra.mxu0 %v226
  %v485 = vpop.f32.mrf.mxu0
  %v486 = vadd.f32 %v132, %v485
  %v487 = vpop.f32.mrf.mxu0
  %v488 = vpop.f32.mrf.mxu0
  %v489 = vadd.f32 %v132, %v488
  %v490 = vpop.f32.mrf.mxu0
  %491 = vmatprep.mubr.bf16.mxu0 0
  %492 = vmatmul.mubr.bf16.gmra.mxu0 %v229
  %v493 = vpop.f32.mrf.mxu0
  %v494 = vadd.f32 %v132, %v493
  %v495 = vpop.f32.mrf.mxu0
  %v496 = vpop.f32.mrf.mxu0
  %v497 = vadd.f32 %v132, %v496
  %v498 = vpop.f32.mrf.mxu0
  %499 = vmatprep.mubr.bf16.mxu0 0
  %500 = vmatmul.mubr.bf16.gmra.mxu0 %v232
  %v501 = vpop.f32.mrf.mxu0
  %v502 = vadd.f32 %v132, %v501
  %v503 = vpop.f32.mrf.mxu0
  %v504 = vpop.f32.mrf.mxu0
  %v505 = vadd.f32 %v132, %v504
  %v506 = vpop.f32.mrf.mxu0
  %507 = vmatprep.mubr.bf16.mxu0 0
  %508 = vmatmul.mubr.bf16.gmra.mxu0 %v235
  %v509 = vpop.f32.mrf.mxu0
  %v510 = vadd.f32 %v132, %v509
  %v511 = vpop.f32.mrf.mxu0
  %v512 = vpop.f32.mrf.mxu0
  %v513 = vadd.f32 %v132, %v512
  %v514 = vpop.f32.mrf.mxu0
  %515 = vmatprep.mubr.bf16.mxu0 0
  %516 = vmatmul.mubr.bf16.gmra.mxu0 %v238
  %v517 = vpop.f32.mrf.mxu0
  %v518 = vadd.f32 %v132, %v517
  %v519 = vpop.f32.mrf.mxu0
  %v520 = vpop.f32.mrf.mxu0
  %v521 = vadd.f32 %v132, %v520
  %v522 = vpop.f32.mrf.mxu0
  %523 = vmatprep.mubr.bf16.mxu0 0
  %524 = vmatmul.mubr.bf16.gmra.mxu0 %v241
  %v525 = vpop.f32.mrf.mxu0
  %v526 = vadd.f32 %v132, %v525
  %v527 = vpop.f32.mrf.mxu0
  %v528 = vpop.f32.mrf.mxu0
  %v529 = vadd.f32 %v132, %v528
  %v530 = vpop.f32.mrf.mxu0
  %531 = vdwg.mxu0
  %v532 = vmax.f32 %v278, 0.0
  %v533 = vmax.f32 %v281, 0.0
  %v534 = vmax.f32 %v286, 0.0
  %v535 = vmax.f32 %v289, 0.0
  %v536 = vmax.f32 %v294, 0.0
  %v537 = vmax.f32 %v297, 0.0
  %v538 = vmax.f32 %v302, 0.0
  %v539 = vmax.f32 %v305, 0.0
  %v540 = vmax.f32 %v310, 0.0
  %v541 = vmax.f32 %v313, 0.0
  %v542 = vmax.f32 %v318, 0.0
  %v543 = vmax.f32 %v321, 0.0
  %v544 = vmax.f32 %v326, 0.0
  %v545 = vmax.f32 %v329, 0.0
  %v546 = vmax.f32 %v334, 0.0
  %v547 = vmax.f32 %v337, 0.0
  %v548 = vmax.f32 %v342, 0.0
  %v549 = vmax.f32 %v345, 0.0
  %v550 = vmax.f32 %v350, 0.0
  %v551 = vmax.f32 %v353, 0.0
  %v552 = vmax.f32 %v358, 0.0
  %v553 = vmax.f32 %v361, 0.0
  %v554 = vmax.f32 %v366, 0.0
  %v555 = vmax.f32 %v369, 0.0
  %v556 = vmax.f32 %v374, 0.0
  %v557 = vmax.f32 %v377, 0.0
  %v558 = vmax.f32 %v382, 0.0
  %v559 = vmax.f32 %v385, 0.0
  %v560 = vmax.f32 %v390, 0.0
  %v561 = vmax.f32 %v393, 0.0
  %v562 = vmax.f32 %v398, 0.0
  %v563 = vmax.f32 %v401, 0.0
  %v564 = vmax.f32 %v406, 0.0
  %v565 = vmax.f32 %v409, 0.0
  %v566 = vmax.f32 %v414, 0.0
  %v567 = vmax.f32 %v417, 0.0
  %v568 = vmax.f32 %v422, 0.0
  %v569 = vmax.f32 %v425, 0.0
  %v570 = vmax.f32 %v430, 0.0
  %v571 = vmax.f32 %v433, 0.0
  %v572 = vmax.f32 %v438, 0.0
  %v573 = vmax.f32 %v441, 0.0
  %v574 = vmax.f32 %v446, 0.0
  %v575 = vmax.f32 %v449, 0.0
  %v576 = vmax.f32 %v454, 0.0
  %v577 = vmax.f32 %v457, 0.0
  %v578 = vmax.f32 %v462, 0.0
  %v579 = vmax.f32 %v465, 0.0
  %v580 = vmax.f32 %v470, 0.0
  %v581 = vmax.f32 %v473, 0.0
  %v582 = vmax.f32 %v478, 0.0
  %v583 = vmax.f32 %v481, 0.0
  %v584 = vmax.f32 %v486, 0.0
  %v585 = vmax.f32 %v489, 0.0
  %v586 = vmax.f32 %v494, 0.0
  %v587 = vmax.f32 %v497, 0.0
  %v588 = vmax.f32 %v502, 0.0
  %v589 = vmax.f32 %v505, 0.0
  %v590 = vmax.f32 %v510, 0.0
  %v591 = vmax.f32 %v513, 0.0
  %v592 = vmax.f32 %v518, 0.0
  %v593 = vmax.f32 %v521, 0.0
  %v594 = vmax.f32 %v526, 0.0
  %v595 = vmax.f32 %v529, 0.0
  %v596 = vpack.c.bf16 %v533, %v532
  %v597 = vpack.c.bf16 %v535, %v534
  %v598 = vpack.c.bf16 %v537, %v536
  %v599 = vpack.c.bf16 %v539, %v538
  %v600 = vpack.c.bf16 %v541, %v540
  %v601 = vpack.c.bf16 %v543, %v542
  %v602 = vpack.c.bf16 %v545, %v544
  %v603 = vpack.c.bf16 %v547, %v546
  %v604 = vpack.c.bf16 %v549, %v548
  %v605 = vpack.c.bf16 %v551, %v550
  %v606 = vpack.c.bf16 %v553, %v552
  %v607 = vpack.c.bf16 %v555, %v554
  %v608 = vpack.c.bf16 %v557, %v556
  %v609 = vpack.c.bf16 %v559, %v558
  %v610 = vpack.c.bf16 %v561, %v560
  %v611 = vpack.c.bf16 %v563, %v562
  %v612 = vpack.c.bf16 %v565, %v564
  %v613 = vpack.c.bf16 %v567, %v566
  %v614 = vpack.c.bf16 %v569, %v568
  %v615 = vpack.c.bf16 %v571, %v570
  %v616 = vpack.c.bf16 %v573, %v572
  %v617 = vpack.c.bf16 %v575, %v574
  %v618 = vpack.c.bf16 %v577, %v576
  %v619 = vpack.c.bf16 %v579, %v578
  %v620 = vpack.c.bf16 %v581, %v580
  %v621 = vpack.c.bf16 %v583, %v582
  %v622 = vpack.c.bf16 %v585, %v584
  %v623 = vpack.c.bf16 %v587, %v586
  %v624 = vpack.c.bf16 %v589, %v588
  %v625 = vpack.c.bf16 %v591, %v590
  %v626 = vpack.c.bf16 %v593, %v592
  %v627 = vpack.c.bf16 %v595, %v594
  %v628 = vld [vmem:[%s3] sm:$0xf]
  %v629 = vld [vmem:[%s3 + $0x4] sm:$0xf]
  %v630 = vld [vmem:[%s3 + $0x8] sm:$0xf]
  %v631 = vld [vmem:[%s3 + $0xc] sm:$0xf]
  %v632 = vld [vmem:[%s3 + $0x10] sm:$0xf]
  %v633 = vld [vmem:[%s3 + $0x14] sm:$0xf]
  %v634 = vld [vmem:[%s3 + $0x18] sm:$0xf]
  %v635 = vld [vmem:[%s3 + $0x1c] sm:$0xf]
  %v636 = vld [vmem:[%s4] sm:$0x1]
  %v638 = vlaneseq
  %v639 = vshrl.u32 %v638, 7
  %v640 = vsub.s32 0, %v639
  %v641 = vrot.slane %v636, %v640
  %v651 = vunpack.c.l.b16 %v628
  %v652 = vunpack.c.l.b16 %v629
  %v653 = vunpack.c.l.b16 %v630
  %v654 = vunpack.c.l.b16 %v631
  %v655 = vunpack.c.l.b16 %v632
  %v656 = vunpack.c.l.b16 %v633
  %v657 = vunpack.c.l.b16 %v634
  %v658 = vunpack.c.l.b16 %v635
  %v659 = vpack.c.b16 %v652, %v651
  %v660 = vpack.c.b16 %v654, %v653
  %v661 = vpack.c.b16 %v656, %v655
  %v662 = vpack.c.b16 %v658, %v657
  %vm667 = vcmask 523264
  %v669 = vsel %vm667, %v596, 0
  %v672 = vsel %vm667, %v597, 0
  %v675 = vsel %vm667, %v598, 0
  %v678 = vsel %vm667, %v599, 0
  %v681 = vsel %vm667, %v600, 0
  %v684 = vsel %vm667, %v601, 0
  %v687 = vsel %vm667, %v602, 0
  %v690 = vsel %vm667, %v603, 0
  %v693 = vsel %vm667, %v604, 0
  %v696 = vsel %vm667, %v605, 0
  %v699 = vsel %vm667, %v606, 0
  %v702 = vsel %vm667, %v607, 0
  %v705 = vsel %vm667, %v608, 0
  %v708 = vsel %vm667, %v609, 0
  %v711 = vsel %vm667, %v610, 0
  %v714 = vsel %vm667, %v611, 0
  %v717 = vsel %vm667, %v612, 0
  %v720 = vsel %vm667, %v613, 0
  %v723 = vsel %vm667, %v614, 0
  %v726 = vsel %vm667, %v615, 0
  %v729 = vsel %vm667, %v616, 0
  %v732 = vsel %vm667, %v617, 0
  %v735 = vsel %vm667, %v618, 0
  %v738 = vsel %vm667, %v619, 0
  %v741 = vsel %vm667, %v620, 0
  %v744 = vsel %vm667, %v621, 0
  %v747 = vsel %vm667, %v622, 0
  %v750 = vsel %vm667, %v623, 0
  %v753 = vsel %vm667, %v624, 0
  %v756 = vsel %vm667, %v625, 0
  %v759 = vsel %vm667, %v626, 0
  %v762 = vsel %vm667, %v627, 0
  %764 = vmatprep.subr.bf16.mxu0 0
  %765 = vmatpush1.bf16.msra.mxu0 0
  %766 = vmatprep.subr.bf16.mxu0 0
  %767 = vmatpush1.bf16.msra.mxu0 0
  %768 = vmatprep.subr.bf16.mxu0 0
  %769 = vmatpush1.bf16.msra.mxu0 0
  %770 = vmatprep.subr.bf16.mxu0 0
  %771 = vmatpush1.bf16.msra.mxu0 0
  %772 = vmatprep.subr.bf16.mxu0 0
  %773 = vmatpush1.bf16.msra.mxu0 %v662
  %774 = vmatprep.subr.bf16.mxu0 0
  %775 = vmatpush1.bf16.msra.mxu0 %v661
  %776 = vmatprep.subr.bf16.mxu0 0
  %777 = vmatpush1.bf16.msra.mxu0 %v660
  %778 = vmatprep.subr.bf16.mxu0 0
  %779 = vmatpush1.bf16.msra.mxu0 %v659
  %780 = vmatprep.subr.bf16.mxu0 0
  %781 = vmatpush2.bf16.msra.mxu0 0
  %782 = vmatprep.subr.bf16.mxu0 0
  %783 = vmatpush2.bf16.msra.mxu0 0
  %784 = vmatprep.subr.bf16.mxu0 0
  %785 = vmatpush2.bf16.msra.mxu0 0
  %786 = vmatprep.subr.bf16.mxu0 0
  %787 = vmatpush2.bf16.msra.mxu0 0
  %788 = vmatprep.subr.bf16.mxu0 0
  %789 = vmatpush2.bf16.msra.mxu0 0
  %790 = vmatprep.subr.bf16.mxu0 0
  %791 = vmatpush2.bf16.msra.mxu0 0
  %792 = vmatprep.subr.bf16.mxu0 0
  %793 = vmatpush2.bf16.msra.mxu0 0
  %794 = vmatprep.subr.bf16.mxu0 0
  %795 = vmatpush2.bf16.msra.mxu0 0
  %796 = vmatprep.mubr.bf16.mxu0 0
  %797 = vmatmul.mubr.bf16.gmra.mxu0 %v669
  %v798 = vpop.f32.mrf.mxu0
  %v799 = vadd.f32 %v641, %v798
  %v800 = vpop.f32.mrf.mxu0
  %v801 = vpop.f32.mrf.mxu0
  %v802 = vadd.f32 %v641, %v801
  %v803 = vpop.f32.mrf.mxu0
  %804 = vmatprep.mubr.bf16.mxu0 0
  %805 = vmatmul.mubr.bf16.gmra.mxu0 %v672
  %v806 = vpop.f32.mrf.mxu0
  %v807 = vadd.f32 %v641, %v806
  %v808 = vpop.f32.mrf.mxu0
  %v809 = vpop.f32.mrf.mxu0
  %v810 = vadd.f32 %v641, %v809
  %v811 = vpop.f32.mrf.mxu0
  %812 = vmatprep.mubr.bf16.mxu0 0
  %813 = vmatmul.mubr.bf16.gmra.mxu0 %v675
  %v814 = vpop.f32.mrf.mxu0
  %v815 = vadd.f32 %v641, %v814
  %v816 = vpop.f32.mrf.mxu0
  %v817 = vpop.f32.mrf.mxu0
  %v818 = vadd.f32 %v641, %v817
  %v819 = vpop.f32.mrf.mxu0
  %820 = vmatprep.mubr.bf16.mxu0 0
  %821 = vmatmul.mubr.bf16.gmra.mxu0 %v678
  %v822 = vpop.f32.mrf.mxu0
  %v823 = vadd.f32 %v641, %v822
  %v824 = vpop.f32.mrf.mxu0
  %v825 = vpop.f32.mrf.mxu0
  %v826 = vadd.f32 %v641, %v825
  %v827 = vpop.f32.mrf.mxu0
  %828 = vmatprep.mubr.bf16.mxu0 0
  %829 = vmatmul.mubr.bf16.gmra.mxu0 %v681
  %v830 = vpop.f32.mrf.mxu0
  %v831 = vadd.f32 %v641, %v830
  %v832 = vpop.f32.mrf.mxu0
  %v833 = vpop.f32.mrf.mxu0
  %v834 = vadd.f32 %v641, %v833
  %v835 = vpop.f32.mrf.mxu0
  %836 = vmatprep.mubr.bf16.mxu0 0
  %837 = vmatmul.mubr.bf16.gmra.mxu0 %v684
  %v838 = vpop.f32.mrf.mxu0
  %v839 = vadd.f32 %v641, %v838
  %v840 = vpop.f32.mrf.mxu0
  %v841 = vpop.f32.mrf.mxu0
  %v842 = vadd.f32 %v641, %v841
  %v843 = vpop.f32.mrf.mxu0
  %844 = vmatprep.mubr.bf16.mxu0 0
  %845 = vmatmul.mubr.bf16.gmra.mxu0 %v687
  %v846 = vpop.f32.mrf.mxu0
  %v847 = vadd.f32 %v641, %v846
  %v848 = vpop.f32.mrf.mxu0
  %v849 = vpop.f32.mrf.mxu0
  %v850 = vadd.f32 %v641, %v849
  %v851 = vpop.f32.mrf.mxu0
  %852 = vmatprep.mubr.bf16.mxu0 0
  %853 = vmatmul.mubr.bf16.gmra.mxu0 %v690
  %v854 = vpop.f32.mrf.mxu0
  %v855 = vadd.f32 %v641, %v854
  %v856 = vpop.f32.mrf.mxu0
  %v857 = vpop.f32.mrf.mxu0
  %v858 = vadd.f32 %v641, %v857
  %v859 = vpop.f32.mrf.mxu0
  %860 = vmatprep.mubr.bf16.mxu0 0
  %861 = vmatmul.mubr.bf16.gmra.mxu0 %v693
  %v862 = vpop.f32.mrf.mxu0
  %v863 = vadd.f32 %v641, %v862
  %v864 = vpop.f32.mrf.mxu0
  %v865 = vpop.f32.mrf.mxu0
  %v866 = vadd.f32 %v641, %v865
  %v867 = vpop.f32.mrf.mxu0
  %868 = vmatprep.mubr.bf16.mxu0 0
  %869 = vmatmul.mubr.bf16.gmra.mxu0 %v696
  %v870 = vpop.f32.mrf.mxu0
  %v871 = vadd.f32 %v641, %v870
  %v872 = vpop.f32.mrf.mxu0
  %v873 = vpop.f32.mrf.mxu0
  %v874 = vadd.f32 %v641, %v873
  %v875 = vpop.f32.mrf.mxu0
  %876 = vmatprep.mubr.bf16.mxu0 0
  %877 = vmatmul.mubr.bf16.gmra.mxu0 %v699
  %v878 = vpop.f32.mrf.mxu0
  %v879 = vadd.f32 %v641, %v878
  %v880 = vpop.f32.mrf.mxu0
  %v881 = vpop.f32.mrf.mxu0
  %v882 = vadd.f32 %v641, %v881
  %v883 = vpop.f32.mrf.mxu0
  %884 = vmatprep.mubr.bf16.mxu0 0
  %885 = vmatmul.mubr.bf16.gmra.mxu0 %v702
  %v886 = vpop.f32.mrf.mxu0
  %v887 = vadd.f32 %v641, %v886
  %v888 = vpop.f32.mrf.mxu0
  %v889 = vpop.f32.mrf.mxu0
  %v890 = vadd.f32 %v641, %v889
  %v891 = vpop.f32.mrf.mxu0
  %892 = vmatprep.mubr.bf16.mxu0 0
  %893 = vmatmul.mubr.bf16.gmra.mxu0 %v705
  %v894 = vpop.f32.mrf.mxu0
  %v895 = vadd.f32 %v641, %v894
  %v896 = vpop.f32.mrf.mxu0
  %v897 = vpop.f32.mrf.mxu0
  %v898 = vadd.f32 %v641, %v897
  %v899 = vpop.f32.mrf.mxu0
  %900 = vmatprep.mubr.bf16.mxu0 0
  %901 = vmatmul.mubr.bf16.gmra.mxu0 %v708
  %v902 = vpop.f32.mrf.mxu0
  %v903 = vadd.f32 %v641, %v902
  %v904 = vpop.f32.mrf.mxu0
  %v905 = vpop.f32.mrf.mxu0
  %v906 = vadd.f32 %v641, %v905
  %v907 = vpop.f32.mrf.mxu0
  %908 = vmatprep.mubr.bf16.mxu0 0
  %909 = vmatmul.mubr.bf16.gmra.mxu0 %v711
  %v910 = vpop.f32.mrf.mxu0
  %v911 = vadd.f32 %v641, %v910
  %v912 = vpop.f32.mrf.mxu0
  %v913 = vpop.f32.mrf.mxu0
  %v914 = vadd.f32 %v641, %v913
  %v915 = vpop.f32.mrf.mxu0
  %916 = vmatprep.mubr.bf16.mxu0 0
  %917 = vmatmul.mubr.bf16.gmra.mxu0 %v714
  %v918 = vpop.f32.mrf.mxu0
  %v919 = vadd.f32 %v641, %v918
  %v920 = vpop.f32.mrf.mxu0
  %v921 = vpop.f32.mrf.mxu0
  %v922 = vadd.f32 %v641, %v921
  %v923 = vpop.f32.mrf.mxu0
  %924 = vmatprep.mubr.bf16.mxu0 0
  %925 = vmatmul.mubr.bf16.gmra.mxu0 %v717
  %v926 = vpop.f32.mrf.mxu0
  %v927 = vadd.f32 %v641, %v926
  %v928 = vpop.f32.mrf.mxu0
  %v929 = vpop.f32.mrf.mxu0
  %v930 = vadd.f32 %v641, %v929
  %v931 = vpop.f32.mrf.mxu0
  %932 = vmatprep.mubr.bf16.mxu0 0
  %933 = vmatmul.mubr.bf16.gmra.mxu0 %v720
  %v934 = vpop.f32.mrf.mxu0
  %v935 = vadd.f32 %v641, %v934
  %v936 = vpop.f32.mrf.mxu0
  %v937 = vpop.f32.mrf.mxu0
  %v938 = vadd.f32 %v641, %v937
  %v939 = vpop.f32.mrf.mxu0
  %940 = vmatprep.mubr.bf16.mxu0 0
  %941 = vmatmul.mubr.bf16.gmra.mxu0 %v723
  %v942 = vpop.f32.mrf.mxu0
  %v943 = vadd.f32 %v641, %v942
  %v944 = vpop.f32.mrf.mxu0
  %v945 = vpop.f32.mrf.mxu0
  %v946 = vadd.f32 %v641, %v945
  %v947 = vpop.f32.mrf.mxu0
  %948 = vmatprep.mubr.bf16.mxu0 0
  %949 = vmatmul.mubr.bf16.gmra.mxu0 %v726
  %v950 = vpop.f32.mrf.mxu0
  %v951 = vadd.f32 %v641, %v950
  %v952 = vpop.f32.mrf.mxu0
  %v953 = vpop.f32.mrf.mxu0
  %v954 = vadd.f32 %v641, %v953
  %v955 = vpop.f32.mrf.mxu0
  %956 = vmatprep.mubr.bf16.mxu0 0
  %957 = vmatmul.mubr.bf16.gmra.mxu0 %v729
  %v958 = vpop.f32.mrf.mxu0
  %v959 = vadd.f32 %v641, %v958
  %v960 = vpop.f32.mrf.mxu0
  %v961 = vpop.f32.mrf.mxu0
  %v962 = vadd.f32 %v641, %v961
  %v963 = vpop.f32.mrf.mxu0
  %964 = vmatprep.mubr.bf16.mxu0 0
  %965 = vmatmul.mubr.bf16.gmra.mxu0 %v732
  %v966 = vpop.f32.mrf.mxu0
  %v967 = vadd.f32 %v641, %v966
  %v968 = vpop.f32.mrf.mxu0
  %v969 = vpop.f32.mrf.mxu0
  %v970 = vadd.f32 %v641, %v969
  %v971 = vpop.f32.mrf.mxu0
  %972 = vmatprep.mubr.bf16.mxu0 0
  %973 = vmatmul.mubr.bf16.gmra.mxu0 %v735
  %v974 = vpop.f32.mrf.mxu0
  %v975 = vadd.f32 %v641, %v974
  %v976 = vpop.f32.mrf.mxu0
  %v977 = vpop.f32.mrf.mxu0
  %v978 = vadd.f32 %v641, %v977
  %v979 = vpop.f32.mrf.mxu0
  %980 = vmatprep.mubr.bf16.mxu0 0
  %981 = vmatmul.mubr.bf16.gmra.mxu0 %v738
  %v982 = vpop.f32.mrf.mxu0
  %v983 = vadd.f32 %v641, %v982
  %v984 = vpop.f32.mrf.mxu0
  %v985 = vpop.f32.mrf.mxu0
  %v986 = vadd.f32 %v641, %v985
  %v987 = vpop.f32.mrf.mxu0
  %988 = vmatprep.mubr.bf16.mxu0 0
  %989 = vmatmul.mubr.bf16.gmra.mxu0 %v741
  %v990 = vpop.f32.mrf.mxu0
  %v991 = vadd.f32 %v641, %v990
  %v992 = vpop.f32.mrf.mxu0
  %v993 = vpop.f32.mrf.mxu0
  %v994 = vadd.f32 %v641, %v993
  %v995 = vpop.f32.mrf.mxu0
  %996 = vmatprep.mubr.bf16.mxu0 0
  %997 = vmatmul.mubr.bf16.gmra.mxu0 %v744
  %v998 = vpop.f32.mrf.mxu0
  %v999 = vadd.f32 %v641, %v998
  %v1000 = vpop.f32.mrf.mxu0
  %v1001 = vpop.f32.mrf.mxu0
  %v1002 = vadd.f32 %v641, %v1001
  %v1003 = vpop.f32.mrf.mxu0
  %1004 = vmatprep.mubr.bf16.mxu0 0
  %1005 = vmatmul.mubr.bf16.gmra.mxu0 %v747
  %v1006 = vpop.f32.mrf.mxu0
  %v1007 = vadd.f32 %v641, %v1006
  %v1008 = vpop.f32.mrf.mxu0
  %v1009 = vpop.f32.mrf.mxu0
  %v1010 = vadd.f32 %v641, %v1009
  %v1011 = vpop.f32.mrf.mxu0
  %1012 = vmatprep.mubr.bf16.mxu0 0
  %1013 = vmatmul.mubr.bf16.gmra.mxu0 %v750
  %v1014 = vpop.f32.mrf.mxu0
  %v1015 = vadd.f32 %v641, %v1014
  %v1016 = vpop.f32.mrf.mxu0
  %v1017 = vpop.f32.mrf.mxu0
  %v1018 = vadd.f32 %v641, %v1017
  %v1019 = vpop.f32.mrf.mxu0
  %1020 = vmatprep.mubr.bf16.mxu0 0
  %1021 = vmatmul.mubr.bf16.gmra.mxu0 %v753
  %v1022 = vpop.f32.mrf.mxu0
  %v1023 = vadd.f32 %v641, %v1022
  %v1024 = vpop.f32.mrf.mxu0
  %v1025 = vpop.f32.mrf.mxu0
  %v1026 = vadd.f32 %v641, %v1025
  %v1027 = vpop.f32.mrf.mxu0
  %1028 = vmatprep.mubr.bf16.mxu0 0
  %1029 = vmatmul.mubr.bf16.gmra.mxu0 %v756
  %v1030 = vpop.f32.mrf.mxu0
  %v1031 = vadd.f32 %v641, %v1030
  %v1032 = vpop.f32.mrf.mxu0
  %v1033 = vpop.f32.mrf.mxu0
  %v1034 = vadd.f32 %v641, %v1033
  %v1035 = vpop.f32.mrf.mxu0
  %1036 = vmatprep.mubr.bf16.mxu0 0
  %1037 = vmatmul.mubr.bf16.gmra.mxu0 %v759
  %v1038 = vpop.f32.mrf.mxu0
  %v1039 = vadd.f32 %v641, %v1038
  %v1040 = vpop.f32.mrf.mxu0
  %v1041 = vpop.f32.mrf.mxu0
  %v1042 = vadd.f32 %v641, %v1041
  %v1043 = vpop.f32.mrf.mxu0
  %1044 = vmatprep.mubr.bf16.mxu0 0
  %1045 = vmatmul.mubr.bf16.gmra.mxu0 %v762
  %v1046 = vpop.f32.mrf.mxu0
  %v1047 = vadd.f32 %v641, %v1046
  %v1048 = vpop.f32.mrf.mxu0
  %v1049 = vpop.f32.mrf.mxu0
  %v1050 = vadd.f32 %v641, %v1049
  %v1051 = vpop.f32.mrf.mxu0
  %1052 = vdwg.mxu0
  %v1053 = vmax.f32 %v799, 0.0
  %v1054 = vmax.f32 %v802, 0.0
  %v1055 = vmax.f32 %v807, 0.0
  %v1056 = vmax.f32 %v810, 0.0
  %v1057 = vmax.f32 %v815, 0.0
  %v1058 = vmax.f32 %v818, 0.0
  %v1059 = vmax.f32 %v823, 0.0
  %v1060 = vmax.f32 %v826, 0.0
  %v1061 = vmax.f32 %v831, 0.0
  %v1062 = vmax.f32 %v834, 0.0
  %v1063 = vmax.f32 %v839, 0.0
  %v1064 = vmax.f32 %v842, 0.0
  %v1065 = vmax.f32 %v847, 0.0
  %v1066 = vmax.f32 %v850, 0.0
  %v1067 = vmax.f32 %v855, 0.0
  %v1068 = vmax.f32 %v858, 0.0
  %v1069 = vmax.f32 %v863, 0.0
  %v1070 = vmax.f32 %v866, 0.0
  %v1071 = vmax.f32 %v871, 0.0
  %v1072 = vmax.f32 %v874, 0.0
  %v1073 = vmax.f32 %v879, 0.0
  %v1074 = vmax.f32 %v882, 0.0
  %v1075 = vmax.f32 %v887, 0.0
  %v1076 = vmax.f32 %v890, 0.0
  %v1077 = vmax.f32 %v895, 0.0
  %v1078 = vmax.f32 %v898, 0.0
  %v1079 = vmax.f32 %v903, 0.0
  %v1080 = vmax.f32 %v906, 0.0
  %v1081 = vmax.f32 %v911, 0.0
  %v1082 = vmax.f32 %v914, 0.0
  %v1083 = vmax.f32 %v919, 0.0
  %v1084 = vmax.f32 %v922, 0.0
  %v1085 = vmax.f32 %v927, 0.0
  %v1086 = vmax.f32 %v930, 0.0
  %v1087 = vmax.f32 %v935, 0.0
  %v1088 = vmax.f32 %v938, 0.0
  %v1089 = vmax.f32 %v943, 0.0
  %v1090 = vmax.f32 %v946, 0.0
  %v1091 = vmax.f32 %v951, 0.0
  %v1092 = vmax.f32 %v954, 0.0
  %v1093 = vmax.f32 %v959, 0.0
  %v1094 = vmax.f32 %v962, 0.0
  %v1095 = vmax.f32 %v967, 0.0
  %v1096 = vmax.f32 %v970, 0.0
  %v1097 = vmax.f32 %v975, 0.0
  %v1098 = vmax.f32 %v978, 0.0
  %v1099 = vmax.f32 %v983, 0.0
  %v1100 = vmax.f32 %v986, 0.0
  %v1101 = vmax.f32 %v991, 0.0
  %v1102 = vmax.f32 %v994, 0.0
  %v1103 = vmax.f32 %v999, 0.0
  %v1104 = vmax.f32 %v1002, 0.0
  %v1105 = vmax.f32 %v1007, 0.0
  %v1106 = vmax.f32 %v1010, 0.0
  %v1107 = vmax.f32 %v1015, 0.0
  %v1108 = vmax.f32 %v1018, 0.0
  %v1109 = vmax.f32 %v1023, 0.0
  %v1110 = vmax.f32 %v1026, 0.0
  %v1111 = vmax.f32 %v1031, 0.0
  %v1112 = vmax.f32 %v1034, 0.0
  %v1113 = vmax.f32 %v1039, 0.0
  %v1114 = vmax.f32 %v1042, 0.0
  %v1115 = vmax.f32 %v1047, 0.0
  %v1116 = vmax.f32 %v1050, 0.0
  %v1117 = vpack.c.bf16 %v1054, %v1053
  %v1118 = vpack.c.bf16 %v1056, %v1055
  %v1119 = vpack.c.bf16 %v1058, %v1057
  %v1120 = vpack.c.bf16 %v1060, %v1059
  %v1121 = vpack.c.bf16 %v1062, %v1061
  %v1122 = vpack.c.bf16 %v1064, %v1063
  %v1123 = vpack.c.bf16 %v1066, %v1065
  %v1124 = vpack.c.bf16 %v1068, %v1067
  %v1125 = vpack.c.bf16 %v1070, %v1069
  %v1126 = vpack.c.bf16 %v1072, %v1071
  %v1127 = vpack.c.bf16 %v1074, %v1073
  %v1128 = vpack.c.bf16 %v1076, %v1075
  %v1129 = vpack.c.bf16 %v1078, %v1077
  %v1130 = vpack.c.bf16 %v1080, %v1079
  %v1131 = vpack.c.bf16 %v1082, %v1081
  %v1132 = vpack.c.bf16 %v1084, %v1083
  %v1133 = vpack.c.bf16 %v1086, %v1085
  %v1134 = vpack.c.bf16 %v1088, %v1087
  %v1135 = vpack.c.bf16 %v1090, %v1089
  %v1136 = vpack.c.bf16 %v1092, %v1091
  %v1137 = vpack.c.bf16 %v1094, %v1093
  %v1138 = vpack.c.bf16 %v1096, %v1095
  %v1139 = vpack.c.bf16 %v1098, %v1097
  %v1140 = vpack.c.bf16 %v1100, %v1099
  %v1141 = vpack.c.bf16 %v1102, %v1101
  %v1142 = vpack.c.bf16 %v1104, %v1103
  %v1143 = vpack.c.bf16 %v1106, %v1105
  %v1144 = vpack.c.bf16 %v1108, %v1107
  %v1145 = vpack.c.bf16 %v1110, %v1109
  %v1146 = vpack.c.bf16 %v1112, %v1111
  %v1147 = vpack.c.bf16 %v1114, %v1113
  %v1148 = vpack.c.bf16 %v1116, %v1115
  %v1149 = vld [vmem:[%s5] sm:$0xf]
  %v1150 = vld [vmem:[%s5 + $0x4] sm:$0xf]
  %v1151 = vld [vmem:[%s5 + $0x8] sm:$0xf]
  %v1152 = vld [vmem:[%s5 + $0xc] sm:$0xf]
  %v1153 = vld [vmem:[%s5 + $0x10] sm:$0xf]
  %v1154 = vld [vmem:[%s5 + $0x14] sm:$0xf]
  %v1155 = vld [vmem:[%s5 + $0x18] sm:$0xf]
  %v1156 = vld [vmem:[%s5 + $0x1c] sm:$0xf]
  %v1157 = vld [vmem:[%s6] sm:$0x1]
  %v1159 = vlaneseq
  %v1160 = vshrl.u32 %v1159, 7
  %v1161 = vsub.s32 0, %v1160
  %v1162 = vrot.slane %v1157, %v1161
  %v1172 = vunpack.c.l.b16 %v1149
  %v1173 = vunpack.c.l.b16 %v1150
  %v1174 = vunpack.c.l.b16 %v1151
  %v1175 = vunpack.c.l.b16 %v1152
  %v1176 = vunpack.c.l.b16 %v1153
  %v1177 = vunpack.c.l.b16 %v1154
  %v1178 = vunpack.c.l.b16 %v1155
  %v1179 = vunpack.c.l.b16 %v1156
  %v1180 = vpack.c.b16 %v1173, %v1172
  %v1181 = vpack.c.b16 %v1175, %v1174
  %v1182 = vpack.c.b16 %v1177, %v1176
  %v1183 = vpack.c.b16 %v1179, %v1178
  %v1189 = vsel %vm667, %v1117, 0
  %v1192 = vsel %vm667, %v1118, 0
  %v1195 = vsel %vm667, %v1119, 0
  %v1198 = vsel %vm667, %v1120, 0
  %v1201 = vsel %vm667, %v1121, 0
  %v1204 = vsel %vm667, %v1122, 0
  %v1207 = vsel %vm667, %v1123, 0
  %v1210 = vsel %vm667, %v1124, 0
  %v1213 = vsel %vm667, %v1125, 0
  %v1216 = vsel %vm667, %v1126, 0
  %v1219 = vsel %vm667, %v1127, 0
  %v1222 = vsel %vm667, %v1128, 0
  %v1225 = vsel %vm667, %v1129, 0
  %v1228 = vsel %vm667, %v1130, 0
  %v1231 = vsel %vm667, %v1131, 0
  %v1234 = vsel %vm667, %v1132, 0
  %v1237 = vsel %vm667, %v1133, 0
  %v1240 = vsel %vm667, %v1134, 0
  %v1243 = vsel %vm667, %v1135, 0
  %v1246 = vsel %vm667, %v1136, 0
  %v1249 = vsel %vm667, %v1137, 0
  %v1252 = vsel %vm667, %v1138, 0
  %v1255 = vsel %vm667, %v1139, 0
  %v1258 = vsel %vm667, %v1140, 0
  %v1261 = vsel %vm667, %v1141, 0
  %v1264 = vsel %vm667, %v1142, 0
  %v1267 = vsel %vm667, %v1143, 0
  %v1270 = vsel %vm667, %v1144, 0
  %v1273 = vsel %vm667, %v1145, 0
  %v1276 = vsel %vm667, %v1146, 0
  %v1279 = vsel %vm667, %v1147, 0
  %v1282 = vsel %vm667, %v1148, 0
  %1284 = vmatprep.subr.bf16.mxu0 0
  %1285 = vmatpush1.bf16.msra.mxu0 0
  %1286 = vmatprep.subr.bf16.mxu0 0
  %1287 = vmatpush1.bf16.msra.mxu0 0
  %1288 = vmatprep.subr.bf16.mxu0 0
  %1289 = vmatpush1.bf16.msra.mxu0 0
  %1290 = vmatprep.subr.bf16.mxu0 0
  %1291 = vmatpush1.bf16.msra.mxu0 0
  %1292 = vmatprep.subr.bf16.mxu0 0
  %1293 = vmatpush1.bf16.msra.mxu0 %v1183
  %1294 = vmatprep.subr.bf16.mxu0 0
  %1295 = vmatpush1.bf16.msra.mxu0 %v1182
  %1296 = vmatprep.subr.bf16.mxu0 0
  %1297 = vmatpush1.bf16.msra.mxu0 %v1181
  %1298 = vmatprep.subr.bf16.mxu0 0
  %1299 = vmatpush1.bf16.msra.mxu0 %v1180
  %1300 = vmatprep.subr.bf16.mxu0 0
  %1301 = vmatpush2.bf16.msra.mxu0 0
  %1302 = vmatprep.subr.bf16.mxu0 0
  %1303 = vmatpush2.bf16.msra.mxu0 0
  %1304 = vmatprep.subr.bf16.mxu0 0
  %1305 = vmatpush2.bf16.msra.mxu0 0
  %1306 = vmatprep.subr.bf16.mxu0 0
  %1307 = vmatpush2.bf16.msra.mxu0 0
  %1308 = vmatprep.subr.bf16.mxu0 0
  %1309 = vmatpush2.bf16.msra.mxu0 0
  %1310 = vmatprep.subr.bf16.mxu0 0
  %1311 = vmatpush2.bf16.msra.mxu0 0
  %1312 = vmatprep.subr.bf16.mxu0 0
  %1313 = vmatpush2.bf16.msra.mxu0 0
  %1314 = vmatprep.subr.bf16.mxu0 0
  %1315 = vmatpush2.bf16.msra.mxu0 0
  %1316 = vmatprep.mubr.bf16.mxu0 0
  %1317 = vmatmul.mubr.bf16.gmra.mxu0 %v1189
  %v1318 = vpop.f32.mrf.mxu0
  %v1319 = vadd.f32 %v1162, %v1318
  %v1320 = vpop.f32.mrf.mxu0
  %v1321 = vpop.f32.mrf.mxu0
  %v1322 = vadd.f32 %v1162, %v1321
  %v1323 = vpop.f32.mrf.mxu0
  %1324 = vmatprep.mubr.bf16.mxu0 0
  %1325 = vmatmul.mubr.bf16.gmra.mxu0 %v1192
  %v1326 = vpop.f32.mrf.mxu0
  %v1327 = vadd.f32 %v1162, %v1326
  %v1328 = vpop.f32.mrf.mxu0
  %v1329 = vpop.f32.mrf.mxu0
  %v1330 = vadd.f32 %v1162, %v1329
  %v1331 = vpop.f32.mrf.mxu0
  %1332 = vmatprep.mubr.bf16.mxu0 0
  %1333 = vmatmul.mubr.bf16.gmra.mxu0 %v1195
  %v1334 = vpop.f32.mrf.mxu0
  %v1335 = vadd.f32 %v1162, %v1334
  %v1336 = vpop.f32.mrf.mxu0
  %v1337 = vpop.f32.mrf.mxu0
  %v1338 = vadd.f32 %v1162, %v1337
  %v1339 = vpop.f32.mrf.mxu0
  %1340 = vmatprep.mubr.bf16.mxu0 0
  %1341 = vmatmul.mubr.bf16.gmra.mxu0 %v1198
  %v1342 = vpop.f32.mrf.mxu0
  %v1343 = vadd.f32 %v1162, %v1342
  %v1344 = vpop.f32.mrf.mxu0
  %v1345 = vpop.f32.mrf.mxu0
  %v1346 = vadd.f32 %v1162, %v1345
  %v1347 = vpop.f32.mrf.mxu0
  %1348 = vmatprep.mubr.bf16.mxu0 0
  %1349 = vmatmul.mubr.bf16.gmra.mxu0 %v1201
  %v1350 = vpop.f32.mrf.mxu0
  %v1351 = vadd.f32 %v1162, %v1350
  %v1352 = vpop.f32.mrf.mxu0
  %v1353 = vpop.f32.mrf.mxu0
  %v1354 = vadd.f32 %v1162, %v1353
  %v1355 = vpop.f32.mrf.mxu0
  %1356 = vmatprep.mubr.bf16.mxu0 0
  %1357 = vmatmul.mubr.bf16.gmra.mxu0 %v1204
  %v1358 = vpop.f32.mrf.mxu0
  %v1359 = vadd.f32 %v1162, %v1358
  %v1360 = vpop.f32.mrf.mxu0
  %v1361 = vpop.f32.mrf.mxu0
  %v1362 = vadd.f32 %v1162, %v1361
  %v1363 = vpop.f32.mrf.mxu0
  %1364 = vmatprep.mubr.bf16.mxu0 0
  %1365 = vmatmul.mubr.bf16.gmra.mxu0 %v1207
  %v1366 = vpop.f32.mrf.mxu0
  %v1367 = vadd.f32 %v1162, %v1366
  %v1368 = vpop.f32.mrf.mxu0
  %v1369 = vpop.f32.mrf.mxu0
  %v1370 = vadd.f32 %v1162, %v1369
  %v1371 = vpop.f32.mrf.mxu0
  %1372 = vmatprep.mubr.bf16.mxu0 0
  %1373 = vmatmul.mubr.bf16.gmra.mxu0 %v1210
  %v1374 = vpop.f32.mrf.mxu0
  %v1375 = vadd.f32 %v1162, %v1374
  %v1376 = vpop.f32.mrf.mxu0
  %v1377 = vpop.f32.mrf.mxu0
  %v1378 = vadd.f32 %v1162, %v1377
  %v1379 = vpop.f32.mrf.mxu0
  %1380 = vmatprep.mubr.bf16.mxu0 0
  %1381 = vmatmul.mubr.bf16.gmra.mxu0 %v1213
  %v1382 = vpop.f32.mrf.mxu0
  %v1383 = vadd.f32 %v1162, %v1382
  %v1384 = vpop.f32.mrf.mxu0
  %v1385 = vpop.f32.mrf.mxu0
  %v1386 = vadd.f32 %v1162, %v1385
  %v1387 = vpop.f32.mrf.mxu0
  %1388 = vmatprep.mubr.bf16.mxu0 0
  %1389 = vmatmul.mubr.bf16.gmra.mxu0 %v1216
  %v1390 = vpop.f32.mrf.mxu0
  %v1391 = vadd.f32 %v1162, %v1390
  %v1392 = vpop.f32.mrf.mxu0
  %v1393 = vpop.f32.mrf.mxu0
  %v1394 = vadd.f32 %v1162, %v1393
  %v1395 = vpop.f32.mrf.mxu0
  %1396 = vmatprep.mubr.bf16.mxu0 0
  %1397 = vmatmul.mubr.bf16.gmra.mxu0 %v1219
  %v1398 = vpop.f32.mrf.mxu0
  %v1399 = vadd.f32 %v1162, %v1398
  %v1400 = vpop.f32.mrf.mxu0
  %v1401 = vpop.f32.mrf.mxu0
  %v1402 = vadd.f32 %v1162, %v1401
  %v1403 = vpop.f32.mrf.mxu0
  %1404 = vmatprep.mubr.bf16.mxu0 0
  %1405 = vmatmul.mubr.bf16.gmra.mxu0 %v1222
  %v1406 = vpop.f32.mrf.mxu0
  %v1407 = vadd.f32 %v1162, %v1406
  %v1408 = vpop.f32.mrf.mxu0
  %v1409 = vpop.f32.mrf.mxu0
  %v1410 = vadd.f32 %v1162, %v1409
  %v1411 = vpop.f32.mrf.mxu0
  %1412 = vmatprep.mubr.bf16.mxu0 0
  %1413 = vmatmul.mubr.bf16.gmra.mxu0 %v1225
  %v1414 = vpop.f32.mrf.mxu0
  %v1415 = vadd.f32 %v1162, %v1414
  %v1416 = vpop.f32.mrf.mxu0
  %v1417 = vpop.f32.mrf.mxu0
  %v1418 = vadd.f32 %v1162, %v1417
  %v1419 = vpop.f32.mrf.mxu0
  %1420 = vmatprep.mubr.bf16.mxu0 0
  %1421 = vmatmul.mubr.bf16.gmra.mxu0 %v1228
  %v1422 = vpop.f32.mrf.mxu0
  %v1423 = vadd.f32 %v1162, %v1422
  %v1424 = vpop.f32.mrf.mxu0
  %v1425 = vpop.f32.mrf.mxu0
  %v1426 = vadd.f32 %v1162, %v1425
  %v1427 = vpop.f32.mrf.mxu0
  %1428 = vmatprep.mubr.bf16.mxu0 0
  %1429 = vmatmul.mubr.bf16.gmra.mxu0 %v1231
  %v1430 = vpop.f32.mrf.mxu0
  %v1431 = vadd.f32 %v1162, %v1430
  %v1432 = vpop.f32.mrf.mxu0
  %v1433 = vpop.f32.mrf.mxu0
  %v1434 = vadd.f32 %v1162, %v1433
  %v1435 = vpop.f32.mrf.mxu0
  %1436 = vmatprep.mubr.bf16.mxu0 0
  %1437 = vmatmul.mubr.bf16.gmra.mxu0 %v1234
  %v1438 = vpop.f32.mrf.mxu0
  %v1439 = vadd.f32 %v1162, %v1438
  %v1440 = vpop.f32.mrf.mxu0
  %v1441 = vpop.f32.mrf.mxu0
  %v1442 = vadd.f32 %v1162, %v1441
  %v1443 = vpop.f32.mrf.mxu0
  %1444 = vmatprep.mubr.bf16.mxu0 0
  %1445 = vmatmul.mubr.bf16.gmra.mxu0 %v1237
  %v1446 = vpop.f32.mrf.mxu0
  %v1447 = vadd.f32 %v1162, %v1446
  %v1448 = vpop.f32.mrf.mxu0
  %v1449 = vpop.f32.mrf.mxu0
  %v1450 = vadd.f32 %v1162, %v1449
  %v1451 = vpop.f32.mrf.mxu0
  %1452 = vmatprep.mubr.bf16.mxu0 0
  %1453 = vmatmul.mubr.bf16.gmra.mxu0 %v1240
  %v1454 = vpop.f32.mrf.mxu0
  %v1455 = vadd.f32 %v1162, %v1454
  %v1456 = vpop.f32.mrf.mxu0
  %v1457 = vpop.f32.mrf.mxu0
  %v1458 = vadd.f32 %v1162, %v1457
  %v1459 = vpop.f32.mrf.mxu0
  %1460 = vmatprep.mubr.bf16.mxu0 0
  %1461 = vmatmul.mubr.bf16.gmra.mxu0 %v1243
  %v1462 = vpop.f32.mrf.mxu0
  %v1463 = vadd.f32 %v1162, %v1462
  %v1464 = vpop.f32.mrf.mxu0
  %v1465 = vpop.f32.mrf.mxu0
  %v1466 = vadd.f32 %v1162, %v1465
  %v1467 = vpop.f32.mrf.mxu0
  %1468 = vmatprep.mubr.bf16.mxu0 0
  %1469 = vmatmul.mubr.bf16.gmra.mxu0 %v1246
  %v1470 = vpop.f32.mrf.mxu0
  %v1471 = vadd.f32 %v1162, %v1470
  %v1472 = vpop.f32.mrf.mxu0
  %v1473 = vpop.f32.mrf.mxu0
  %v1474 = vadd.f32 %v1162, %v1473
  %v1475 = vpop.f32.mrf.mxu0
  %1476 = vmatprep.mubr.bf16.mxu0 0
  %1477 = vmatmul.mubr.bf16.gmra.mxu0 %v1249
  %v1478 = vpop.f32.mrf.mxu0
  %v1479 = vadd.f32 %v1162, %v1478
  %v1480 = vpop.f32.mrf.mxu0
  %v1481 = vpop.f32.mrf.mxu0
  %v1482 = vadd.f32 %v1162, %v1481
  %v1483 = vpop.f32.mrf.mxu0
  %1484 = vmatprep.mubr.bf16.mxu0 0
  %1485 = vmatmul.mubr.bf16.gmra.mxu0 %v1252
  %v1486 = vpop.f32.mrf.mxu0
  %v1487 = vadd.f32 %v1162, %v1486
  %v1488 = vpop.f32.mrf.mxu0
  %v1489 = vpop.f32.mrf.mxu0
  %v1490 = vadd.f32 %v1162, %v1489
  %v1491 = vpop.f32.mrf.mxu0
  %1492 = vmatprep.mubr.bf16.mxu0 0
  %1493 = vmatmul.mubr.bf16.gmra.mxu0 %v1255
  %v1494 = vpop.f32.mrf.mxu0
  %v1495 = vadd.f32 %v1162, %v1494
  %v1496 = vpop.f32.mrf.mxu0
  %v1497 = vpop.f32.mrf.mxu0
  %v1498 = vadd.f32 %v1162, %v1497
  %v1499 = vpop.f32.mrf.mxu0
  %1500 = vmatprep.mubr.bf16.mxu0 0
  %1501 = vmatmul.mubr.bf16.gmra.mxu0 %v1258
  %v1502 = vpop.f32.mrf.mxu0
  %v1503 = vadd.f32 %v1162, %v1502
  %v1504 = vpop.f32.mrf.mxu0
  %v1505 = vpop.f32.mrf.mxu0
  %v1506 = vadd.f32 %v1162, %v1505
  %v1507 = vpop.f32.mrf.mxu0
  %1508 = vmatprep.mubr.bf16.mxu0 0
  %1509 = vmatmul.mubr.bf16.gmra.mxu0 %v1261
  %v1510 = vpop.f32.mrf.mxu0
  %v1511 = vadd.f32 %v1162, %v1510
  %v1512 = vpop.f32.mrf.mxu0
  %v1513 = vpop.f32.mrf.mxu0
  %v1514 = vadd.f32 %v1162, %v1513
  %v1515 = vpop.f32.mrf.mxu0
  %1516 = vmatprep.mubr.bf16.mxu0 0
  %1517 = vmatmul.mubr.bf16.gmra.mxu0 %v1264
  %v1518 = vpop.f32.mrf.mxu0
  %v1519 = vadd.f32 %v1162, %v1518
  %v1520 = vpop.f32.mrf.mxu0
  %v1521 = vpop.f32.mrf.mxu0
  %v1522 = vadd.f32 %v1162, %v1521
  %v1523 = vpop.f32.mrf.mxu0
  %1524 = vmatprep.mubr.bf16.mxu0 0
  %1525 = vmatmul.mubr.bf16.gmra.mxu0 %v1267
  %v1526 = vpop.f32.mrf.mxu0
  %v1527 = vadd.f32 %v1162, %v1526
  %v1528 = vpop.f32.mrf.mxu0
  %v1529 = vpop.f32.mrf.mxu0
  %v1530 = vadd.f32 %v1162, %v1529
  %v1531 = vpop.f32.mrf.mxu0
  %1532 = vmatprep.mubr.bf16.mxu0 0
  %1533 = vmatmul.mubr.bf16.gmra.mxu0 %v1270
  %v1534 = vpop.f32.mrf.mxu0
  %v1535 = vadd.f32 %v1162, %v1534
  %v1536 = vpop.f32.mrf.mxu0
  %v1537 = vpop.f32.mrf.mxu0
  %v1538 = vadd.f32 %v1162, %v1537
  %v1539 = vpop.f32.mrf.mxu0
  %1540 = vmatprep.mubr.bf16.mxu0 0
  %1541 = vmatmul.mubr.bf16.gmra.mxu0 %v1273
  %v1542 = vpop.f32.mrf.mxu0
  %v1543 = vadd.f32 %v1162, %v1542
  %v1544 = vpop.f32.mrf.mxu0
  %v1545 = vpop.f32.mrf.mxu0
  %v1546 = vadd.f32 %v1162, %v1545
  %v1547 = vpop.f32.mrf.mxu0
  %1548 = vmatprep.mubr.bf16.mxu0 0
  %1549 = vmatmul.mubr.bf16.gmra.mxu0 %v1276
  %v1550 = vpop.f32.mrf.mxu0
  %v1551 = vadd.f32 %v1162, %v1550
  %v1552 = vpop.f32.mrf.mxu0
  %v1553 = vpop.f32.mrf.mxu0
  %v1554 = vadd.f32 %v1162, %v1553
  %v1555 = vpop.f32.mrf.mxu0
  %1556 = vmatprep.mubr.bf16.mxu0 0
  %1557 = vmatmul.mubr.bf16.gmra.mxu0 %v1279
  %v1558 = vpop.f32.mrf.mxu0
  %v1559 = vadd.f32 %v1162, %v1558
  %v1560 = vpop.f32.mrf.mxu0
  %v1561 = vpop.f32.mrf.mxu0
  %v1562 = vadd.f32 %v1162, %v1561
  %v1563 = vpop.f32.mrf.mxu0
  %1564 = vmatprep.mubr.bf16.mxu0 0
  %1565 = vmatmul.mubr.bf16.gmra.mxu0 %v1282
  %v1566 = vpop.f32.mrf.mxu0
  %v1567 = vadd.f32 %v1162, %v1566
  %v1568 = vpop.f32.mrf.mxu0
  %v1569 = vpop.f32.mrf.mxu0
  %v1570 = vadd.f32 %v1162, %v1569
  %v1571 = vpop.f32.mrf.mxu0
  %1572 = vdwg.mxu0
  %vm1573 = vcmask 130048
  %1574 = vst.msk [vmem:[%s7] sm:$0xff] %vm1573, %v1319
  %1575 = vst.msk [vmem:[%s7 + $0x8] sm:$0xff] %vm1573, %v1322
  %1576 = vst.msk [vmem:[%s7 + $0x10] sm:$0xff] %vm1573, %v1327
  %1577 = vst.msk [vmem:[%s7 + $0x18] sm:$0xff] %vm1573, %v1330
  %1578 = vst.msk [vmem:[%s7 + $0x20] sm:$0xff] %vm1573, %v1335
  %1579 = vst.msk [vmem:[%s7 + $0x28] sm:$0xff] %vm1573, %v1338
  %1580 = vst.msk [vmem:[%s7 + $0x30] sm:$0xff] %vm1573, %v1343
  %1581 = vst.msk [vmem:[%s7 + $0x38] sm:$0xff] %vm1573, %v1346
  %1582 = vst.msk [vmem:[%s7 + $0x40] sm:$0xff] %vm1573, %v1351
  %1583 = vst.msk [vmem:[%s7 + $0x48] sm:$0xff] %vm1573, %v1354
  %1584 = vst.msk [vmem:[%s7 + $0x50] sm:$0xff] %vm1573, %v1359
  %1585 = vst.msk [vmem:[%s7 + $0x58] sm:$0xff] %vm1573, %v1362
  %1586 = vst.msk [vmem:[%s7 + $0x60] sm:$0xff] %vm1573, %v1367
  %1587 = vst.msk [vmem:[%s7 + $0x68] sm:$0xff] %vm1573, %v1370
  %1588 = vst.msk [vmem:[%s7 + $0x70] sm:$0xff] %vm1573, %v1375
  %1589 = vst.msk [vmem:[%s7 + $0x78] sm:$0xff] %vm1573, %v1378
  %1590 = vst.msk [vmem:[%s7 + $0x80] sm:$0xff] %vm1573, %v1383
  %1591 = vst.msk [vmem:[%s7 + $0x88] sm:$0xff] %vm1573, %v1386
  %1592 = vst.msk [vmem:[%s7 + $0x90] sm:$0xff] %vm1573, %v1391
  %1593 = vst.msk [vmem:[%s7 + $0x98] sm:$0xff] %vm1573, %v1394
  %1594 = vst.msk [vmem:[%s7 + $0xa0] sm:$0xff] %vm1573, %v1399
  %1595 = vst.msk [vmem:[%s7 + $0xa8] sm:$0xff] %vm1573, %v1402
  %1596 = vst.msk [vmem:[%s7 + $0xb0] sm:$0xff] %vm1573, %v1407
  %1597 = vst.msk [vmem:[%s7 + $0xb8] sm:$0xff] %vm1573, %v1410
  %1598 = vst.msk [vmem:[%s7 + $0xc0] sm:$0xff] %vm1573, %v1415
  %1599 = vst.msk [vmem:[%s7 + $0xc8] sm:$0xff] %vm1573, %v1418
  %1600 = vst.msk [vmem:[%s7 + $0xd0] sm:$0xff] %vm1573, %v1423
  %1601 = vst.msk [vmem:[%s7 + $0xd8] sm:$0xff] %vm1573, %v1426
  %1602 = vst.msk [vmem:[%s7 + $0xe0] sm:$0xff] %vm1573, %v1431
  %1603 = vst.msk [vmem:[%s7 + $0xe8] sm:$0xff] %vm1573, %v1434
  %1604 = vst.msk [vmem:[%s7 + $0xf0] sm:$0xff] %vm1573, %v1439
  %1605 = vst.msk [vmem:[%s7 + $0xf8] sm:$0xff] %vm1573, %v1442
  %1606 = vst.msk [vmem:[%s7 + $0x100] sm:$0xff] %vm1573, %v1447
  %1607 = vst.msk [vmem:[%s7 + $0x108] sm:$0xff] %vm1573, %v1450
  %1608 = vst.msk [vmem:[%s7 + $0x110] sm:$0xff] %vm1573, %v1455
  %1609 = vst.msk [vmem:[%s7 + $0x118] sm:$0xff] %vm1573, %v1458
  %1610 = vst.msk [vmem:[%s7 + $0x120] sm:$0xff] %vm1573, %v1463
  %1611 = vst.msk [vmem:[%s7 + $0x128] sm:$0xff] %vm1573, %v1466
  %1612 = vst.msk [vmem:[%s7 + $0x130] sm:$0xff] %vm1573, %v1471
  %1613 = vst.msk [vmem:[%s7 + $0x138] sm:$0xff] %vm1573, %v1474
  %1614 = vst.msk [vmem:[%s7 + $0x140] sm:$0xff] %vm1573, %v1479
  %1615 = vst.msk [vmem:[%s7 + $0x148] sm:$0xff] %vm1573, %v1482
  %1616 = vst.msk [vmem:[%s7 + $0x150] sm:$0xff] %vm1573, %v1487
  %1617 = vst.msk [vmem:[%s7 + $0x158] sm:$0xff] %vm1573, %v1490
  %1618 = vst.msk [vmem:[%s7 + $0x160] sm:$0xff] %vm1573, %v1495
  %1619 = vst.msk [vmem:[%s7 + $0x168] sm:$0xff] %vm1573, %v1498
  %1620 = vst.msk [vmem:[%s7 + $0x170] sm:$0xff] %vm1573, %v1503
  %1621 = vst.msk [vmem:[%s7 + $0x178] sm:$0xff] %vm1573, %v1506
  %1622 = vst.msk [vmem:[%s7 + $0x180] sm:$0xff] %vm1573, %v1511
  %1623 = vst.msk [vmem:[%s7 + $0x188] sm:$0xff] %vm1573, %v1514
  %1624 = vst.msk [vmem:[%s7 + $0x190] sm:$0xff] %vm1573, %v1519
  %1625 = vst.msk [vmem:[%s7 + $0x198] sm:$0xff] %vm1573, %v1522
  %1626 = vst.msk [vmem:[%s7 + $0x1a0] sm:$0xff] %vm1573, %v1527
  %1627 = vst.msk [vmem:[%s7 + $0x1a8] sm:$0xff] %vm1573, %v1530
  %1628 = vst.msk [vmem:[%s7 + $0x1b0] sm:$0xff] %vm1573, %v1535
  %1629 = vst.msk [vmem:[%s7 + $0x1b8] sm:$0xff] %vm1573, %v1538
  %1630 = vst.msk [vmem:[%s7 + $0x1c0] sm:$0xff] %vm1573, %v1543
  %1631 = vst.msk [vmem:[%s7 + $0x1c8] sm:$0xff] %vm1573, %v1546
  %1632 = vst.msk [vmem:[%s7 + $0x1d0] sm:$0xff] %vm1573, %v1551
  %1633 = vst.msk [vmem:[%s7 + $0x1d8] sm:$0xff] %vm1573, %v1554
  %1634 = vst.msk [vmem:[%s7 + $0x1e0] sm:$0xff] %vm1573, %v1559
  %1635 = vst.msk [vmem:[%s7 + $0x1e8] sm:$0xff] %vm1573, %v1562
  %1636 = vst.msk [vmem:[%s7 + $0x1f0] sm:$0xff] %vm1573, %v1567
  %1637 = vst.msk [vmem:[%s7 + $0x1f8] sm:$0xff] %vm1573, %v1570
  // Predicated region
  $region30: #{_forward_impl.1} parent=0 // pred_check
    _
  $region31: #{_forward_impl.1} parent=0 // pred_check_branch
    %1639 = sbr.rel (0) target = $region33
  $region32: #{_forward_impl.1} parent=0 // pred_region
    _
  $region33: #{_forward_impl.1} parent=0 // pred_fallthru
    _
  // Predicated region
  $region34: #{_forward_impl.1} parent=0 // pred_check
    _
  $region35: #{_forward_impl.1} parent=0 // pred_check_branch
    %1641 = sbr.rel (0) target = $region37
  $region36: #{_forward_impl.1} parent=0 // pred_region
    _
  $region37: #{_forward_impl.1} parent=0 // pred_fallthru
    _

</llo_original>
